<compile_context>
chip_gen: v7x
topology: tpu7x:2x2x1
jax: 0.10.0
libtpu: 0.0.40
codegen_flags: <defaults>
</compile_context>

<pallas_src>
import functools
import numpy as np

import jax
import jax.numpy as jnp
from jax.experimental import pallas as pl
from jax.experimental.pallas import tpu as pltpu


# ----------------------------------------------------------------------------
# host-side constant builders
# ----------------------------------------------------------------------------
def _bilinear_matrix(n_out, n_in):
    """1-D bilinear (align_corners=True) interpolation matrix (n_out, n_in)."""
    A = np.zeros((n_out, n_in), np.float32)
    if n_out == 1 or n_in == 1:
        A[:, 0] = 1.0
        return A
    for o in range(n_out):
        src = o * (n_in - 1) / (n_out - 1)
        i0 = min(int(np.floor(src)), n_in - 1)
        i1 = min(i0 + 1, n_in - 1)
        f = src - i0
        A[o, i0] += 1.0 - f
        A[o, i1] += f
    return A


def _upsample_pad_matrix(H1, W1, H2, W2):
    """Dense (H1*W1, H2*W2) operator M such that x_flat @ M equals
    F.pad(2x bilinear align_corners=True upsample of x) flattened row-major."""
    Ho, Wo = 2 * H1, 2 * W1
    assert H2 >= Ho and W2 >= Wo
    Ah = np.zeros((H2, H1), np.float32)
    Aw = np.zeros((W2, W1), np.float32)
    Ah[(H2 - Ho) // 2:(H2 - Ho) // 2 + Ho, :] = _bilinear_matrix(Ho, H1)
    Aw[(W2 - Wo) // 2:(W2 - Wo) // 2 + Wo, :] = _bilinear_matrix(Wo, W1)
    # M[h*W1 + w, ho*W2 + wo] = Ah[ho, h] * Aw[wo, w]
    return np.ascontiguousarray(np.kron(Ah, Aw).T)


def _conv3x3_tap_masks(H, W):
    """mask[t, h*W+w] == 1 iff source pixel (h+dy-1, w+dx-1) is inside the image
    (t = dy*3 + dx).  Applied to the lane-rolled input it cancels both the zero
    padding of the SAME conv and any roll wrap-around."""
    m = np.zeros((9, H * W), np.float32)
    for t in range(9):
        dy, dx = divmod(t, 3)
        for h in range(H):
            hh = h + dy - 1
            if not (0 <= hh < H):
                continue
            for w in range(W):
                ww = w + dx - 1
                if 0 <= ww < W:
                    m[t, h * W + w] = 1.0
    return m


# ----------------------------------------------------------------------------
# the single fused kernel:  upsample+pad  ->  (virtual concat)  ->  DoubleConv
# all values are (channels, H*W) with the lane axis = H*W (lane-dense).
# ----------------------------------------------------------------------------
def _up_fused_kernel(masks_ref, x2_ref, x1_ref, up_ref,
                     w1a_ref, w1b_ref, s1_ref, b1_ref,
                     w2_ref, s2_ref, b2_ref, o_ref, *, W, N, c_out):
    masks = masks_ref[...]                                         # (9, N)

    def conv3x3(pairs):
        """3x3 SAME conv on flattened (C, N) inputs.
        pairs = [(x, w_ref), ...] with w_ref of shape (Cm, 9*C), tap-major.
        Accumulated per dy row-group so the peak patch is only (3*C, N)."""
        acc = None
        for x, w_ref in pairs:
            C = x.shape[0]
            for dy in range(3):
                parts = []
                for dx in range(3):
                    t = 3 * dy + dx
                    off = (dy - 1) * W + (dx - 1)
                    shifted = x if off == 0 else pltpu.roll(
                        x, shift=(-off) % N, axis=1)
                    if t != 4:                                     # centre mask == 1
                        shifted = shifted * masks[t:t + 1]
                    parts.append(shifted)
                sub = jnp.concatenate(parts, axis=0)               # (3*C, N)
                y = jnp.dot(w_ref[:, 3 * dy * C:3 * (dy + 1) * C], sub,
                            preferred_element_type=jnp.float32)
                acc = y if acc is None else acc + y
        return acc

    # fused 2x bilinear upsample + F.pad of x1: one lane-dense MXU matmul
    x1u = jnp.dot(x1_ref[0], up_ref[...],
                  preferred_element_type=jnp.float32)              # (C1p, N)
    x2 = x2_ref[0]                                                 # (C2p, N)

    # conv1 over the virtual concat [x2, x1u] via per-branch weight blocks
    y1 = conv3x3([(x2, w1a_ref), (x1u, w1b_ref)])
    y1 = jnp.maximum(y1 * s1_ref[...] + b1_ref[...], 0.0)          # folded BN + ReLU

    y2 = conv3x3([(y1, w2_ref)])
    y2 = jnp.maximum(y2 * s2_ref[...] + b2_ref[...], 0.0)
    o_ref[0] = y2[:c_out]                                          # drop channel pad


# ----------------------------------------------------------------------------
# wrapper
# ----------------------------------------------------------------------------
def _pad_axis_to(a, axis, mult):
    p = (-a.shape[axis]) % mult
    if p == 0:
        return a
    pads = [(0, 0)] * a.ndim
    pads[axis] = (0, p)
    return jnp.pad(a, pads)


def _pack_w(w_hwio):
    """(3,3,Cin,Cout) HWIO -> (Cout, 9*Cin) tap-major deep-matmul weight."""
    kh, kw, ci, co = w_hwio.shape
    return jnp.transpose(w_hwio.reshape(kh * kw, ci, co),
                         (2, 0, 1)).reshape(co, kh * kw * ci)


def up_forward(x1_nchw, x2_nchw, params):
    x1 = x1_nchw.astype(jnp.float32)
    x2 = x2_nchw.astype(jnp.float32)
    B, C1, H1, W1 = x1.shape
    _, C2, H2, W2 = x2.shape
    N, M1 = H2 * W2, H1 * W1
    Cmid = params["w1"].shape[-1]
    Cout = params["w2"].shape[-1]

    # grid-invariant constants
    up_mat = jnp.asarray(_upsample_pad_matrix(H1, W1, H2, W2))     # (M1, N)
    masks = jnp.asarray(_conv3x3_tap_masks(H2, W2))                # (9, N)

    # flatten spatial dims (free reshape) and pad channel axes to 8 sublanes
    x2f = _pad_axis_to(x2.reshape(B, C2, N), 1, 8)                 # (B, C2p, N)
    x1f = _pad_axis_to(x1.reshape(B, C1, M1), 1, 8)                # (B, C1p, M1)
    C2p, C1p = x2f.shape[1], x1f.shape[1]

    # conv1 weight split into x2 / x1 column blocks (concat never materialised)
    w1_hwio = params["w1"]                                         # (3,3,Cin,Cmid)
    w1a = _pack_w(_pad_axis_to(_pad_axis_to(w1_hwio[:, :, :C2, :], 2, 8), 3, 8))
    w1b = _pack_w(_pad_axis_to(_pad_axis_to(w1_hwio[:, :, C2:, :], 2, 8), 3, 8))
    w2 = _pack_w(_pad_axis_to(_pad_axis_to(params["w2"], 2, 8), 3, 8))
    Cmp, Cop = w1a.shape[0], w2.shape[0]

    s1 = _pad_axis_to(params["scale1"].reshape(Cmid, 1), 0, 8)
    b1 = _pad_axis_to(params["bias1"].reshape(Cmid, 1), 0, 8)
    s2 = _pad_axis_to(params["scale2"].reshape(Cout, 1), 0, 8)
    b2 = _pad_axis_to(params["bias2"].reshape(Cout, 1), 0, 8)

    kernel = functools.partial(_up_fused_kernel, W=W2, N=N, c_out=Cout)

    cin_p = C1p + C2p
    flops = 2 * B * N * (C1p * M1 + Cmp * 9 * cin_p + Cop * 9 * Cmp)
    bytes_accessed = 4 * (B * (C2p * N + C1p * M1 + Cout * N)
                          + masks.size + up_mat.size
                          + w1a.size + w1b.size + w2.size
                          + s1.size + b1.size + s2.size + b2.size)

    out = pl.pallas_call(
        kernel,
        out_shape=jax.ShapeDtypeStruct((B, Cout, N), jnp.float32),
        grid=(B,),
        in_specs=[
            pl.BlockSpec((9, N), lambda b: (0, 0)),                # tap masks
            pl.BlockSpec((1, C2p, N), lambda b: (b, 0, 0)),        # x2 (skip)
            pl.BlockSpec((1, C1p, M1), lambda b: (b, 0, 0)),       # x1 (low-res)
            pl.BlockSpec((M1, N), lambda b: (0, 0)),               # upsample+pad op
            pl.BlockSpec((Cmp, 9 * C2p), lambda b: (0, 0)),        # w1 (x2 block)
            pl.BlockSpec((Cmp, 9 * C1p), lambda b: (0, 0)),        # w1 (x1 block)
            pl.BlockSpec((Cmp, 1), lambda b: (0, 0)),              # scale1
            pl.BlockSpec((Cmp, 1), lambda b: (0, 0)),              # bias1
            pl.BlockSpec((Cop, 9 * Cmp), lambda b: (0, 0)),        # w2
            pl.BlockSpec((Cop, 1), lambda b: (0, 0)),              # scale2
            pl.BlockSpec((Cop, 1), lambda b: (0, 0)),              # bias2
        ],
        out_specs=pl.BlockSpec((1, Cout, N), lambda b: (b, 0, 0)),
        compiler_params=pltpu.CompilerParams(dimension_semantics=("parallel",)),
        cost_estimate=pl.CostEstimate(flops=flops, transcendentals=0,
                                      bytes_accessed=bytes_accessed),
    )(masks, x2f, x1f, up_mat, w1a, w1b, s1, b1, w2, s2, b2)

    return out.reshape(B, Cout, H2, W2)


# ----------------------------------------------------------------------------
# deterministic parameter init (synthetic weights; BN folded to scale/bias)
# ----------------------------------------------------------------------------
def init_params(key, in_channels, out_channels, eps=1e-5):
    ks = jax.random.split(key, 10)
    w1 = jax.random.normal(ks[0], (3, 3, in_channels, out_channels), jnp.float32) * 0.1
    w2 = jax.random.normal(ks[1], (3, 3, out_channels, out_channels), jnp.float32) * 0.1

    g1 = jax.random.uniform(ks[2], (out_channels,), jnp.float32, 0.5, 1.5)
    be1 = jax.random.normal(ks[3], (out_channels,), jnp.float32) * 0.1
    m1 = jax.random.normal(ks[4], (out_channels,), jnp.float32) * 0.1
    v1 = jax.random.uniform(ks[5], (out_channels,), jnp.float32, 0.5, 1.5)

    g2 = jax.random.uniform(ks[6], (out_channels,), jnp.float32, 0.5, 1.5)
    be2 = jax.random.normal(ks[7], (out_channels,), jnp.float32) * 0.1
    m2 = jax.random.normal(ks[8], (out_channels,), jnp.float32) * 0.1
    v2 = jax.random.uniform(ks[9], (out_channels,), jnp.float32, 0.5, 1.5)

    s1 = g1 / jnp.sqrt(v1 + eps)
    s2 = g2 / jnp.sqrt(v2 + eps)
    return {
        "w1": w1, "scale1": s1, "bias1": be1 - m1 * s1,
        "w2": w2, "scale2": s2, "bias2": be2 - m2 * s2,
    }


# ----------------------------------------------------------------------------
# pure-JAX reference for correctness checking
# ----------------------------------------------------------------------------
def ref_forward(x1_nchw, x2_nchw, params):
    x1 = jnp.transpose(x1_nchw, (0, 2, 3, 1)).astype(jnp.float32)
    x2 = jnp.transpose(x2_nchw, (0, 2, 3, 1)).astype(jnp.float32)
    B, Hi, Wi, C1 = x1.shape
    Ah = jnp.asarray(_bilinear_matrix(2 * Hi, Hi))
    Aw = jnp.asarray(_bilinear_matrix(2 * Wi, Wi))
    up = jnp.einsum("oh,bhwc->bowc", Ah, x1)
    up = jnp.einsum("pw,bowc->bopc", Aw, up)
    diffY = x2.shape[1] - up.shape[1]
    diffX = x2.shape[2] - up.shape[2]
    up = jnp.pad(up, ((0, 0),
                      (diffY // 2, diffY - diffY // 2),
                      (diffX // 2, diffX - diffX // 2),
                      (0, 0)))
    x = jnp.concatenate([x2, up], axis=-1)

    def conv_bn_relu(x, w, s, b):
        y = jax.lax.conv_general_dilated(
            x, w, (1, 1), "SAME",
            dimension_numbers=("NHWC", "HWIO", "NHWC"))
        return jnp.maximum(y * s + b, 0.0)

    y = conv_bn_relu(x, params["w1"], params["scale1"], params["bias1"])
    y = conv_bn_relu(y, params["w2"], params["scale2"], params["bias2"])
    return jnp.transpose(y, (0, 3, 1, 2))


if __name__ == "__main__":
    key = jax.random.PRNGKey(0)
    k_x1, k_x2, k_p = jax.random.split(key, 3)

    B = 2
    in_channels, out_channels = 8, 4          # Up(8, 4, bilinear=True)
    H2 = W2 = 16                              # skip-connection spatial size
    H1 = W1 = 8                               # low-res feature spatial size
    C1 = in_channels // 2                     # channels of x1 (upsampled branch)
    C2 = in_channels - C1                     # channels of x2 (skip branch)

    x1 = jax.random.normal(k_x1, (B, C1, H1, W1), jnp.float32)   # NCHW
    x2 = jax.random.normal(k_x2, (B, C2, H2, W2), jnp.float32)   # NCHW
    params = init_params(k_p, in_channels, out_channels)

    out = up_forward(x1, x2, params)
    out = jax.block_until_ready(out)

    ref = jax.block_until_ready(ref_forward(x1, x2, params))
    np.testing.assert_allclose(np.asarray(out), np.asarray(ref),
                               rtol=1e-4, atol=1e-4)
    assert out.shape == (B, out_channels, H2, W2)

    print("KERNEL_OK")
</pallas_src>

<mosaic_0001>
module attributes {stable_mosaic.version = 11 : i64} {
  func.func @_up_fused_kernel(%arg0: i32, %arg1: memref<9x256xf32, #tpu.memory_space<vmem>>, %arg2: memref<1x8x256xf32, #tpu.memory_space<vmem>>, %arg3: memref<1x8x64xf32, #tpu.memory_space<vmem>>, %arg4: memref<64x256xf32, #tpu.memory_space<vmem>>, %arg5: memref<8x72xf32, #tpu.memory_space<vmem>>, %arg6: memref<8x72xf32, #tpu.memory_space<vmem>>, %arg7: memref<8x1xf32, #tpu.memory_space<vmem>>, %arg8: memref<8x1xf32, #tpu.memory_space<vmem>>, %arg9: memref<8x72xf32, #tpu.memory_space<vmem>>, %arg10: memref<8x1xf32, #tpu.memory_space<vmem>>, %arg11: memref<8x1xf32, #tpu.memory_space<vmem>>, %arg12: memref<1x4x256xf32, #tpu.memory_space<vmem>>) attributes {dimension_semantics = [#tpu.dimension_semantics<parallel>], iteration_bounds = array<i64: 2>, scalar_prefetch = 0 : i64, scratch_operands = 0 : i64, tpu.core_type = #tpu.core_type<tc>, window_params = [{pipeline_mode = #tpu.pipeline_mode<synchronous>, transform_indices = @transform_0, window_bounds = array<i64: 9, 256>}, {transform_indices = @transform_1, window_bounds = array<i64: 1, 8, 256>}, {transform_indices = @transform_2, window_bounds = array<i64: 1, 8, 64>}, {pipeline_mode = #tpu.pipeline_mode<synchronous>, transform_indices = @transform_3, window_bounds = array<i64: 64, 256>}, {pipeline_mode = #tpu.pipeline_mode<synchronous>, transform_indices = @transform_4, window_bounds = array<i64: 8, 72>}, {pipeline_mode = #tpu.pipeline_mode<synchronous>, transform_indices = @transform_5, window_bounds = array<i64: 8, 72>}, {pipeline_mode = #tpu.pipeline_mode<synchronous>, transform_indices = @transform_6, window_bounds = array<i64: 8, 1>}, {pipeline_mode = #tpu.pipeline_mode<synchronous>, transform_indices = @transform_7, window_bounds = array<i64: 8, 1>}, {pipeline_mode = #tpu.pipeline_mode<synchronous>, transform_indices = @transform_8, window_bounds = array<i64: 8, 72>}, {pipeline_mode = #tpu.pipeline_mode<synchronous>, transform_indices = @transform_9, window_bounds = array<i64: 8, 1>}, {pipeline_mode = #tpu.pipeline_mode<synchronous>, transform_indices = @transform_10, window_bounds = array<i64: 8, 1>}, {transform_indices = @transform_11, window_bounds = array<i64: 1, 4, 256>}]} {
    %c0 = arith.constant 0 : index
    %c0_0 = arith.constant 0 : index
    %0 = vector.load %arg1[%c0, %c0_0] : memref<9x256xf32, #tpu.memory_space<vmem>>, vector<9x256xf32>
    %c0_1 = arith.constant 0 : index
    %c0_2 = arith.constant 0 : index
    %c0_3 = arith.constant 0 : index
    %1 = vector.load %arg3[%c0_1, %c0_2, %c0_3] : memref<1x8x64xf32, #tpu.memory_space<vmem>>, vector<1x8x64xf32>
    %2 = vector.shape_cast %1 : vector<1x8x64xf32> to vector<8x64xf32>
    %c0_4 = arith.constant 0 : index
    %c0_5 = arith.constant 0 : index
    %3 = vector.load %arg4[%c0_4, %c0_5] : memref<64x256xf32, #tpu.memory_space<vmem>>, vector<64x256xf32>
    %cst = arith.constant dense<0.000000e+00> : vector<8x256xf32>
    %4 = tpu.matmul %2, %3, %cst {dimension_numbers = #tpu.dot_dimension_numbers<[1], [0], [0], [1], [0, 0, 1, 1], [], []>} : vector<8x64xf32>, vector<64x256xf32>, vector<8x256xf32> -> vector<8x256xf32>
    %c0_6 = arith.constant 0 : index
    %c0_7 = arith.constant 0 : index
    %c0_8 = arith.constant 0 : index
    %5 = vector.load %arg2[%c0_6, %c0_7, %c0_8] : memref<1x8x256xf32, #tpu.memory_space<vmem>>, vector<1x8x256xf32>
    %6 = vector.shape_cast %5 : vector<1x8x256xf32> to vector<8x256xf32>
    %c17_i32 = arith.constant 17 : i32
    %7 = tpu.dynamic_rotate %6 by %c17_i32 dim 1 : vector<8x256xf32>, i32 -> vector<8x256xf32>
    %8 = vector.extract_strided_slice %0 {offsets = [0, 0], sizes = [1, 256], strides = [1, 1]} : vector<9x256xf32> to vector<1x256xf32>
    %9 = vector.broadcast %8 : vector<1x256xf32> to vector<8x256xf32>
    %10 = arith.mulf %7, %9 : vector<8x256xf32>
    %c16_i32 = arith.constant 16 : i32
    %11 = tpu.dynamic_rotate %6 by %c16_i32 dim 1 : vector<8x256xf32>, i32 -> vector<8x256xf32>
    %12 = vector.extract_strided_slice %0 {offsets = [1, 0], sizes = [1, 256], strides = [1, 1]} : vector<9x256xf32> to vector<1x256xf32>
    %13 = vector.broadcast %12 : vector<1x256xf32> to vector<8x256xf32>
    %14 = arith.mulf %11, %13 : vector<8x256xf32>
    %c15_i32 = arith.constant 15 : i32
    %15 = tpu.dynamic_rotate %6 by %c15_i32 dim 1 : vector<8x256xf32>, i32 -> vector<8x256xf32>
    %16 = vector.extract_strided_slice %0 {offsets = [2, 0], sizes = [1, 256], strides = [1, 1]} : vector<9x256xf32> to vector<1x256xf32>
    %17 = vector.broadcast %16 : vector<1x256xf32> to vector<8x256xf32>
    %18 = arith.mulf %15, %17 : vector<8x256xf32>
    %19 = tpu.concatenate %10, %14, %18 in 0 : vector<8x256xf32>, vector<8x256xf32>, vector<8x256xf32> -> vector<24x256xf32>
    %c0_9 = arith.constant 0 : index
    %c0_10 = arith.constant 0 : index
    %20 = vector.load %arg5[%c0_9, %c0_10] : memref<8x72xf32, #tpu.memory_space<vmem>>, vector<8x24xf32>
    %cst_11 = arith.constant dense<0.000000e+00> : vector<8x256xf32>
    %21 = tpu.matmul %20, %19, %cst_11 {dimension_numbers = #tpu.dot_dimension_numbers<[1], [0], [0], [1], [0, 0, 1, 1], [], []>} : vector<8x24xf32>, vector<24x256xf32>, vector<8x256xf32> -> vector<8x256xf32>
    %c1_i32 = arith.constant 1 : i32
    %22 = tpu.dynamic_rotate %6 by %c1_i32 dim 1 : vector<8x256xf32>, i32 -> vector<8x256xf32>
    %23 = vector.extract_strided_slice %0 {offsets = [3, 0], sizes = [1, 256], strides = [1, 1]} : vector<9x256xf32> to vector<1x256xf32>
    %24 = vector.broadcast %23 : vector<1x256xf32> to vector<8x256xf32>
    %25 = arith.mulf %22, %24 : vector<8x256xf32>
    %c255_i32 = arith.constant 255 : i32
    %26 = tpu.dynamic_rotate %6 by %c255_i32 dim 1 : vector<8x256xf32>, i32 -> vector<8x256xf32>
    %27 = vector.extract_strided_slice %0 {offsets = [5, 0], sizes = [1, 256], strides = [1, 1]} : vector<9x256xf32> to vector<1x256xf32>
    %28 = vector.broadcast %27 : vector<1x256xf32> to vector<8x256xf32>
    %29 = arith.mulf %26, %28 : vector<8x256xf32>
    %30 = tpu.concatenate %25, %6, %29 in 0 : vector<8x256xf32>, vector<8x256xf32>, vector<8x256xf32> -> vector<24x256xf32>
    %c0_12 = arith.constant 0 : index
    %c24 = arith.constant 24 : index
    %31 = vector.load %arg5[%c0_12, %c24] : memref<8x72xf32, #tpu.memory_space<vmem>>, vector<8x24xf32>
    %cst_13 = arith.constant dense<0.000000e+00> : vector<8x256xf32>
    %32 = tpu.matmul %31, %30, %cst_13 {dimension_numbers = #tpu.dot_dimension_numbers<[1], [0], [0], [1], [0, 0, 1, 1], [], []>} : vector<8x24xf32>, vector<24x256xf32>, vector<8x256xf32> -> vector<8x256xf32>
    %33 = arith.addf %21, %32 : vector<8x256xf32>
    %c241_i32 = arith.constant 241 : i32
    %34 = tpu.dynamic_rotate %6 by %c241_i32 dim 1 : vector<8x256xf32>, i32 -> vector<8x256xf32>
    %35 = vector.extract_strided_slice %0 {offsets = [6, 0], sizes = [1, 256], strides = [1, 1]} : vector<9x256xf32> to vector<1x256xf32>
    %36 = vector.broadcast %35 : vector<1x256xf32> to vector<8x256xf32>
    %37 = arith.mulf %34, %36 : vector<8x256xf32>
    %c240_i32 = arith.constant 240 : i32
    %38 = tpu.dynamic_rotate %6 by %c240_i32 dim 1 : vector<8x256xf32>, i32 -> vector<8x256xf32>
    %39 = vector.extract_strided_slice %0 {offsets = [7, 0], sizes = [1, 256], strides = [1, 1]} : vector<9x256xf32> to vector<1x256xf32>
    %40 = vector.broadcast %39 : vector<1x256xf32> to vector<8x256xf32>
    %41 = arith.mulf %38, %40 : vector<8x256xf32>
    %c239_i32 = arith.constant 239 : i32
    %42 = tpu.dynamic_rotate %6 by %c239_i32 dim 1 : vector<8x256xf32>, i32 -> vector<8x256xf32>
    %43 = vector.extract_strided_slice %0 {offsets = [8, 0], sizes = [1, 256], strides = [1, 1]} : vector<9x256xf32> to vector<1x256xf32>
    %44 = vector.broadcast %43 : vector<1x256xf32> to vector<8x256xf32>
    %45 = arith.mulf %42, %44 : vector<8x256xf32>
    %46 = tpu.concatenate %37, %41, %45 in 0 : vector<8x256xf32>, vector<8x256xf32>, vector<8x256xf32> -> vector<24x256xf32>
    %c0_14 = arith.constant 0 : index
    %c48 = arith.constant 48 : index
    %47 = vector.load %arg5[%c0_14, %c48] : memref<8x72xf32, #tpu.memory_space<vmem>>, vector<8x24xf32>
    %cst_15 = arith.constant dense<0.000000e+00> : vector<8x256xf32>
    %48 = tpu.matmul %47, %46, %cst_15 {dimension_numbers = #tpu.dot_dimension_numbers<[1], [0], [0], [1], [0, 0, 1, 1], [], []>} : vector<8x24xf32>, vector<24x256xf32>, vector<8x256xf32> -> vector<8x256xf32>
    %49 = arith.addf %33, %48 : vector<8x256xf32>
    %c17_i32_16 = arith.constant 17 : i32
    %50 = tpu.dynamic_rotate %4 by %c17_i32_16 dim 1 : vector<8x256xf32>, i32 -> vector<8x256xf32>
    %51 = vector.extract_strided_slice %0 {offsets = [0, 0], sizes = [1, 256], strides = [1, 1]} : vector<9x256xf32> to vector<1x256xf32>
    %52 = vector.broadcast %51 : vector<1x256xf32> to vector<8x256xf32>
    %53 = arith.mulf %50, %52 : vector<8x256xf32>
    %c16_i32_17 = arith.constant 16 : i32
    %54 = tpu.dynamic_rotate %4 by %c16_i32_17 dim 1 : vector<8x256xf32>, i32 -> vector<8x256xf32>
    %55 = vector.extract_strided_slice %0 {offsets = [1, 0], sizes = [1, 256], strides = [1, 1]} : vector<9x256xf32> to vector<1x256xf32>
    %56 = vector.broadcast %55 : vector<1x256xf32> to vector<8x256xf32>
    %57 = arith.mulf %54, %56 : vector<8x256xf32>
    %c15_i32_18 = arith.constant 15 : i32
    %58 = tpu.dynamic_rotate %4 by %c15_i32_18 dim 1 : vector<8x256xf32>, i32 -> vector<8x256xf32>
    %59 = vector.extract_strided_slice %0 {offsets = [2, 0], sizes = [1, 256], strides = [1, 1]} : vector<9x256xf32> to vector<1x256xf32>
    %60 = vector.broadcast %59 : vector<1x256xf32> to vector<8x256xf32>
    %61 = arith.mulf %58, %60 : vector<8x256xf32>
    %62 = tpu.concatenate %53, %57, %61 in 0 : vector<8x256xf32>, vector<8x256xf32>, vector<8x256xf32> -> vector<24x256xf32>
    %c0_19 = arith.constant 0 : index
    %c0_20 = arith.constant 0 : index
    %63 = vector.load %arg6[%c0_19, %c0_20] : memref<8x72xf32, #tpu.memory_space<vmem>>, vector<8x24xf32>
    %cst_21 = arith.constant dense<0.000000e+00> : vector<8x256xf32>
    %64 = tpu.matmul %63, %62, %cst_21 {dimension_numbers = #tpu.dot_dimension_numbers<[1], [0], [0], [1], [0, 0, 1, 1], [], []>} : vector<8x24xf32>, vector<24x256xf32>, vector<8x256xf32> -> vector<8x256xf32>
    %65 = arith.addf %49, %64 : vector<8x256xf32>
    %c1_i32_22 = arith.constant 1 : i32
    %66 = tpu.dynamic_rotate %4 by %c1_i32_22 dim 1 : vector<8x256xf32>, i32 -> vector<8x256xf32>
    %67 = vector.extract_strided_slice %0 {offsets = [3, 0], sizes = [1, 256], strides = [1, 1]} : vector<9x256xf32> to vector<1x256xf32>
    %68 = vector.broadcast %67 : vector<1x256xf32> to vector<8x256xf32>
    %69 = arith.mulf %66, %68 : vector<8x256xf32>
    %c255_i32_23 = arith.constant 255 : i32
    %70 = tpu.dynamic_rotate %4 by %c255_i32_23 dim 1 : vector<8x256xf32>, i32 -> vector<8x256xf32>
    %71 = vector.extract_strided_slice %0 {offsets = [5, 0], sizes = [1, 256], strides = [1, 1]} : vector<9x256xf32> to vector<1x256xf32>
    %72 = vector.broadcast %71 : vector<1x256xf32> to vector<8x256xf32>
    %73 = arith.mulf %70, %72 : vector<8x256xf32>
    %74 = tpu.concatenate %69, %4, %73 in 0 : vector<8x256xf32>, vector<8x256xf32>, vector<8x256xf32> -> vector<24x256xf32>
    %c0_24 = arith.constant 0 : index
    %c24_25 = arith.constant 24 : index
    %75 = vector.load %arg6[%c0_24, %c24_25] : memref<8x72xf32, #tpu.memory_space<vmem>>, vector<8x24xf32>
    %cst_26 = arith.constant dense<0.000000e+00> : vector<8x256xf32>
    %76 = tpu.matmul %75, %74, %cst_26 {dimension_numbers = #tpu.dot_dimension_numbers<[1], [0], [0], [1], [0, 0, 1, 1], [], []>} : vector<8x24xf32>, vector<24x256xf32>, vector<8x256xf32> -> vector<8x256xf32>
    %77 = arith.addf %65, %76 : vector<8x256xf32>
    %c241_i32_27 = arith.constant 241 : i32
    %78 = tpu.dynamic_rotate %4 by %c241_i32_27 dim 1 : vector<8x256xf32>, i32 -> vector<8x256xf32>
    %79 = vector.extract_strided_slice %0 {offsets = [6, 0], sizes = [1, 256], strides = [1, 1]} : vector<9x256xf32> to vector<1x256xf32>
    %80 = vector.broadcast %79 : vector<1x256xf32> to vector<8x256xf32>
    %81 = arith.mulf %78, %80 : vector<8x256xf32>
    %c240_i32_28 = arith.constant 240 : i32
    %82 = tpu.dynamic_rotate %4 by %c240_i32_28 dim 1 : vector<8x256xf32>, i32 -> vector<8x256xf32>
    %83 = vector.extract_strided_slice %0 {offsets = [7, 0], sizes = [1, 256], strides = [1, 1]} : vector<9x256xf32> to vector<1x256xf32>
    %84 = vector.broadcast %83 : vector<1x256xf32> to vector<8x256xf32>
    %85 = arith.mulf %82, %84 : vector<8x256xf32>
    %c239_i32_29 = arith.constant 239 : i32
    %86 = tpu.dynamic_rotate %4 by %c239_i32_29 dim 1 : vector<8x256xf32>, i32 -> vector<8x256xf32>
    %87 = vector.extract_strided_slice %0 {offsets = [8, 0], sizes = [1, 256], strides = [1, 1]} : vector<9x256xf32> to vector<1x256xf32>
    %88 = vector.broadcast %87 : vector<1x256xf32> to vector<8x256xf32>
    %89 = arith.mulf %86, %88 : vector<8x256xf32>
    %90 = tpu.concatenate %81, %85, %89 in 0 : vector<8x256xf32>, vector<8x256xf32>, vector<8x256xf32> -> vector<24x256xf32>
    %c0_30 = arith.constant 0 : index
    %c48_31 = arith.constant 48 : index
    %91 = vector.load %arg6[%c0_30, %c48_31] : memref<8x72xf32, #tpu.memory_space<vmem>>, vector<8x24xf32>
    %cst_32 = arith.constant dense<0.000000e+00> : vector<8x256xf32>
    %92 = tpu.matmul %91, %90, %cst_32 {dimension_numbers = #tpu.dot_dimension_numbers<[1], [0], [0], [1], [0, 0, 1, 1], [], []>} : vector<8x24xf32>, vector<24x256xf32>, vector<8x256xf32> -> vector<8x256xf32>
    %93 = arith.addf %77, %92 : vector<8x256xf32>
    %c0_33 = arith.constant 0 : index
    %c0_34 = arith.constant 0 : index
    %94 = vector.load %arg7[%c0_33, %c0_34] : memref<8x1xf32, #tpu.memory_space<vmem>>, vector<8x1xf32>
    %95 = vector.broadcast %94 : vector<8x1xf32> to vector<8x256xf32>
    %96 = arith.mulf %93, %95 : vector<8x256xf32>
    %c0_35 = arith.constant 0 : index
    %c0_36 = arith.constant 0 : index
    %97 = vector.load %arg8[%c0_35, %c0_36] : memref<8x1xf32, #tpu.memory_space<vmem>>, vector<8x1xf32>
    %98 = vector.broadcast %97 : vector<8x1xf32> to vector<8x256xf32>
    %99 = arith.addf %96, %98 : vector<8x256xf32>
    %cst_37 = arith.constant 0.000000e+00 : f32
    %100 = vector.broadcast %cst_37 : f32 to vector<8x256xf32>
    %101 = arith.maximumf %99, %100 : vector<8x256xf32>
    %c17_i32_38 = arith.constant 17 : i32
    %102 = tpu.dynamic_rotate %101 by %c17_i32_38 dim 1 : vector<8x256xf32>, i32 -> vector<8x256xf32>
    %103 = vector.extract_strided_slice %0 {offsets = [0, 0], sizes = [1, 256], strides = [1, 1]} : vector<9x256xf32> to vector<1x256xf32>
    %104 = vector.broadcast %103 : vector<1x256xf32> to vector<8x256xf32>
    %105 = arith.mulf %102, %104 : vector<8x256xf32>
    %c16_i32_39 = arith.constant 16 : i32
    %106 = tpu.dynamic_rotate %101 by %c16_i32_39 dim 1 : vector<8x256xf32>, i32 -> vector<8x256xf32>
    %107 = vector.extract_strided_slice %0 {offsets = [1, 0], sizes = [1, 256], strides = [1, 1]} : vector<9x256xf32> to vector<1x256xf32>
    %108 = vector.broadcast %107 : vector<1x256xf32> to vector<8x256xf32>
    %109 = arith.mulf %106, %108 : vector<8x256xf32>
    %c15_i32_40 = arith.constant 15 : i32
    %110 = tpu.dynamic_rotate %101 by %c15_i32_40 dim 1 : vector<8x256xf32>, i32 -> vector<8x256xf32>
    %111 = vector.extract_strided_slice %0 {offsets = [2, 0], sizes = [1, 256], strides = [1, 1]} : vector<9x256xf32> to vector<1x256xf32>
    %112 = vector.broadcast %111 : vector<1x256xf32> to vector<8x256xf32>
    %113 = arith.mulf %110, %112 : vector<8x256xf32>
    %114 = tpu.concatenate %105, %109, %113 in 0 : vector<8x256xf32>, vector<8x256xf32>, vector<8x256xf32> -> vector<24x256xf32>
    %c0_41 = arith.constant 0 : index
    %c0_42 = arith.constant 0 : index
    %115 = vector.load %arg9[%c0_41, %c0_42] : memref<8x72xf32, #tpu.memory_space<vmem>>, vector<8x24xf32>
    %cst_43 = arith.constant dense<0.000000e+00> : vector<8x256xf32>
    %116 = tpu.matmul %115, %114, %cst_43 {dimension_numbers = #tpu.dot_dimension_numbers<[1], [0], [0], [1], [0, 0, 1, 1], [], []>} : vector<8x24xf32>, vector<24x256xf32>, vector<8x256xf32> -> vector<8x256xf32>
    %c1_i32_44 = arith.constant 1 : i32
    %117 = tpu.dynamic_rotate %101 by %c1_i32_44 dim 1 : vector<8x256xf32>, i32 -> vector<8x256xf32>
    %118 = vector.extract_strided_slice %0 {offsets = [3, 0], sizes = [1, 256], strides = [1, 1]} : vector<9x256xf32> to vector<1x256xf32>
    %119 = vector.broadcast %118 : vector<1x256xf32> to vector<8x256xf32>
    %120 = arith.mulf %117, %119 : vector<8x256xf32>
    %c255_i32_45 = arith.constant 255 : i32
    %121 = tpu.dynamic_rotate %101 by %c255_i32_45 dim 1 : vector<8x256xf32>, i32 -> vector<8x256xf32>
    %122 = vector.extract_strided_slice %0 {offsets = [5, 0], sizes = [1, 256], strides = [1, 1]} : vector<9x256xf32> to vector<1x256xf32>
    %123 = vector.broadcast %122 : vector<1x256xf32> to vector<8x256xf32>
    %124 = arith.mulf %121, %123 : vector<8x256xf32>
    %125 = tpu.concatenate %120, %101, %124 in 0 : vector<8x256xf32>, vector<8x256xf32>, vector<8x256xf32> -> vector<24x256xf32>
    %c0_46 = arith.constant 0 : index
    %c24_47 = arith.constant 24 : index
    %126 = vector.load %arg9[%c0_46, %c24_47] : memref<8x72xf32, #tpu.memory_space<vmem>>, vector<8x24xf32>
    %cst_48 = arith.constant dense<0.000000e+00> : vector<8x256xf32>
    %127 = tpu.matmul %126, %125, %cst_48 {dimension_numbers = #tpu.dot_dimension_numbers<[1], [0], [0], [1], [0, 0, 1, 1], [], []>} : vector<8x24xf32>, vector<24x256xf32>, vector<8x256xf32> -> vector<8x256xf32>
    %128 = arith.addf %116, %127 : vector<8x256xf32>
    %c241_i32_49 = arith.constant 241 : i32
    %129 = tpu.dynamic_rotate %101 by %c241_i32_49 dim 1 : vector<8x256xf32>, i32 -> vector<8x256xf32>
    %130 = vector.extract_strided_slice %0 {offsets = [6, 0], sizes = [1, 256], strides = [1, 1]} : vector<9x256xf32> to vector<1x256xf32>
    %131 = vector.broadcast %130 : vector<1x256xf32> to vector<8x256xf32>
    %132 = arith.mulf %129, %131 : vector<8x256xf32>
    %c240_i32_50 = arith.constant 240 : i32
    %133 = tpu.dynamic_rotate %101 by %c240_i32_50 dim 1 : vector<8x256xf32>, i32 -> vector<8x256xf32>
    %134 = vector.extract_strided_slice %0 {offsets = [7, 0], sizes = [1, 256], strides = [1, 1]} : vector<9x256xf32> to vector<1x256xf32>
    %135 = vector.broadcast %134 : vector<1x256xf32> to vector<8x256xf32>
    %136 = arith.mulf %133, %135 : vector<8x256xf32>
    %c239_i32_51 = arith.constant 239 : i32
    %137 = tpu.dynamic_rotate %101 by %c239_i32_51 dim 1 : vector<8x256xf32>, i32 -> vector<8x256xf32>
    %138 = vector.extract_strided_slice %0 {offsets = [8, 0], sizes = [1, 256], strides = [1, 1]} : vector<9x256xf32> to vector<1x256xf32>
    %139 = vector.broadcast %138 : vector<1x256xf32> to vector<8x256xf32>
    %140 = arith.mulf %137, %139 : vector<8x256xf32>
    %141 = tpu.concatenate %132, %136, %140 in 0 : vector<8x256xf32>, vector<8x256xf32>, vector<8x256xf32> -> vector<24x256xf32>
    %c0_52 = arith.constant 0 : index
    %c48_53 = arith.constant 48 : index
    %142 = vector.load %arg9[%c0_52, %c48_53] : memref<8x72xf32, #tpu.memory_space<vmem>>, vector<8x24xf32>
    %cst_54 = arith.constant dense<0.000000e+00> : vector<8x256xf32>
    %143 = tpu.matmul %142, %141, %cst_54 {dimension_numbers = #tpu.dot_dimension_numbers<[1], [0], [0], [1], [0, 0, 1, 1], [], []>} : vector<8x24xf32>, vector<24x256xf32>, vector<8x256xf32> -> vector<8x256xf32>
    %144 = arith.addf %128, %143 : vector<8x256xf32>
    %c0_55 = arith.constant 0 : index
    %c0_56 = arith.constant 0 : index
    %145 = vector.load %arg10[%c0_55, %c0_56] : memref<8x1xf32, #tpu.memory_space<vmem>>, vector<8x1xf32>
    %146 = vector.broadcast %145 : vector<8x1xf32> to vector<8x256xf32>
    %147 = arith.mulf %144, %146 : vector<8x256xf32>
    %c0_57 = arith.constant 0 : index
    %c0_58 = arith.constant 0 : index
    %148 = vector.load %arg11[%c0_57, %c0_58] : memref<8x1xf32, #tpu.memory_space<vmem>>, vector<8x1xf32>
    %149 = vector.broadcast %148 : vector<8x1xf32> to vector<8x256xf32>
    %150 = arith.addf %147, %149 : vector<8x256xf32>
    %cst_59 = arith.constant 0.000000e+00 : f32
    %151 = vector.broadcast %cst_59 : f32 to vector<8x256xf32>
    %152 = arith.maximumf %150, %151 : vector<8x256xf32>
    %153 = vector.extract_strided_slice %152 {offsets = [0, 0], sizes = [4, 256], strides = [1, 1]} : vector<8x256xf32> to vector<4x256xf32>
    %c0_60 = arith.constant 0 : index
    %c0_61 = arith.constant 0 : index
    %c0_62 = arith.constant 0 : index
    %154 = vector.load %arg12[%c0_60, %c0_61, %c0_62] : memref<1x4x256xf32, #tpu.memory_space<vmem>>, vector<1x4x256xf32>
    %155 = vector.shape_cast %154 : vector<1x4x256xf32> to vector<4x256xf32>
    %156 = vector.shape_cast %153 : vector<4x256xf32> to vector<1x4x256xf32>
    tpu.vector_store %arg12[%c0_60, %c0_61, %c0_62], %156 {strides = array<i32>} : memref<1x4x256xf32, #tpu.memory_space<vmem>>, vector<1x4x256xf32>,
    return
  }
  func.func @transform_0(%arg0: i32) -> (i32, i32) {
    %c0_i32 = arith.constant 0 : i32
    %c0_i32_0 = arith.constant 0 : i32
    %c0_i32_1 = arith.constant 0 : i32
    return %c0_i32, %c0_i32_0 : i32, i32
  }
  func.func @transform_1(%arg0: i32) -> (i32, i32, i32) {
    %c0_i32 = arith.constant 0 : i32
    %c0_i32_0 = arith.constant 0 : i32
    %c0_i32_1 = arith.constant 0 : i32
    return %arg0, %c0_i32, %c0_i32_0 : i32, i32, i32
  }
  func.func @transform_2(%arg0: i32) -> (i32, i32, i32) {
    %c0_i32 = arith.constant 0 : i32
    %c0_i32_0 = arith.constant 0 : i32
    %c0_i32_1 = arith.constant 0 : i32
    return %arg0, %c0_i32, %c0_i32_0 : i32, i32, i32
  }
  func.func @transform_3(%arg0: i32) -> (i32, i32) {
    %c0_i32 = arith.constant 0 : i32
    %c0_i32_0 = arith.constant 0 : i32
    %c0_i32_1 = arith.constant 0 : i32
    return %c0_i32, %c0_i32_0 : i32, i32
  }
  func.func @transform_4(%arg0: i32) -> (i32, i32) {
    %c0_i32 = arith.constant 0 : i32
    %c0_i32_0 = arith.constant 0 : i32
    %c0_i32_1 = arith.constant 0 : i32
    return %c0_i32, %c0_i32_0 : i32, i32
  }
  func.func @transform_5(%arg0: i32) -> (i32, i32) {
    %c0_i32 = arith.constant 0 : i32
    %c0_i32_0 = arith.constant 0 : i32
    %c0_i32_1 = arith.constant 0 : i32
    return %c0_i32, %c0_i32_0 : i32, i32
  }
  func.func @transform_6(%arg0: i32) -> (i32, i32) {
    %c0_i32 = arith.constant 0 : i32
    %c0_i32_0 = arith.constant 0 : i32
    %c0_i32_1 = arith.constant 0 : i32
    return %c0_i32, %c0_i32_0 : i32, i32
  }
  func.func @transform_7(%arg0: i32) -> (i32, i32) {
    %c0_i32 = arith.constant 0 : i32
    %c0_i32_0 = arith.constant 0 : i32
    %c0_i32_1 = arith.constant 0 : i32
    return %c0_i32, %c0_i32_0 : i32, i32
  }
  func.func @transform_8(%arg0: i32) -> (i32, i32) {
    %c0_i32 = arith.constant 0 : i32
    %c0_i32_0 = arith.constant 0 : i32
    %c0_i32_1 = arith.constant 0 : i32
    return %c0_i32, %c0_i32_0 : i32, i32
  }
  func.func @transform_9(%arg0: i32) -> (i32, i32) {
    %c0_i32 = arith.constant 0 : i32
    %c0_i32_0 = arith.constant 0 : i32
    %c0_i32_1 = arith.constant 0 : i32
    return %c0_i32, %c0_i32_0 : i32, i32
  }
  func.func @transform_10(%arg0: i32) -> (i32, i32) {
    %c0_i32 = arith.constant 0 : i32
    %c0_i32_0 = arith.constant 0 : i32
    %c0_i32_1 = arith.constant 0 : i32
    return %c0_i32, %c0_i32_0 : i32, i32
  }
  func.func @transform_11(%arg0: i32) -> (i32, i32, i32) {
    %c0_i32 = arith.constant 0 : i32
    %c0_i32_0 = arith.constant 0 : i32
    %c0_i32_1 = arith.constant 0 : i32
    return %arg0, %c0_i32, %c0_i32_0 : i32, i32, i32
  }
}

</mosaic_0001>

<llo_original>
// kernel: tpu_custom_call.1
$region0: #{tpu_custom_call.1}
  #allocation0 [shape = 'u32[]', space=smem, size = 0x4, offset = 0x4, fixed_abs, tag = 'smem constant byte address 0x4 - core index']
  #allocation1 [shape = 'u32[144,128]{1,0:T(1,128)}', space=vmem, size = 0x12000, scoped, tag = 'internal scratch']
  %s0 = inlined_call_operand.vmem [shape: f32[9,256], index: 0, kind: input, shape index: {}]
  %s1 = inlined_call_operand.hbm [shape: f32[2,8,256], index: 1, kind: input, shape index: {}]
  %s2 = inlined_call_operand.hbm [shape: f32[2,8,64], index: 2, kind: input, shape index: {}]
  %s3 = inlined_call_operand.hbm [shape: f32[64,256], index: 3, kind: input, shape index: {}]
  %s4 = inlined_call_operand.vmem [shape: f32[8,72], index: 4, kind: input, shape index: {}]
  %s5 = inlined_call_operand.vmem [shape: f32[8,72], index: 5, kind: input, shape index: {}]
  %s6 = inlined_call_operand.vmem [shape: f32[8,1], index: 6, kind: input, shape index: {}]
  %s7 = inlined_call_operand.vmem [shape: f32[8,1], index: 7, kind: input, shape index: {}]
  %s8 = inlined_call_operand.vmem [shape: f32[8,72], index: 8, kind: input, shape index: {}]
  %s9 = inlined_call_operand.vmem [shape: f32[8,1], index: 9, kind: input, shape index: {}]
  %s10 = inlined_call_operand.vmem [shape: f32[8,1], index: 10, kind: input, shape index: {}]
  %s11 = inlined_call_operand.hbm [shape: f32[2,4,256], index: 11, kind: output, shape index: {}]
  %s12 = sld [smem:[#allocation0]]
  $region89: #{tpu_custom_call.1} parent=0
    _
  %s14 = ssub.s32 1, %s12
  %s15 = scalar_select 0, %s14, %s12
  $region1: #{tpu_custom_call.1} parent=0
    #allocation2 [shape = 'u8[16384]{0}', space=vmem, size = 0x4000, scoped, tag = 'input window, operand 1']
    #allocation3 [shape = 's32[2]{0}', space=sflag, size = 0x8, scoped, tag = 'scoped memory for tpu_custom_call.1']
    #allocation4 [shape = 's32[2]{0}', space=sflag, size = 0x8, scoped, tag = 'scoped memory for tpu_custom_call.1']
    #allocation5 [shape = 'u8[8192]{0}', space=vmem, size = 0x2000, scoped, tag = 'input window, operand 2']
    #allocation6 [shape = 's32[2]{0}', space=sflag, size = 0x8, scoped, tag = 'scoped memory for tpu_custom_call.1']
    #allocation7 [shape = 'u8[65536]{0}', space=vmem, size = 0x10000, scoped, tag = 'input window, operand 3, single buffered']
    #allocation8 [shape = 'u8[8192]{0}', space=vmem, size = 0x2000, scoped, tag = 'output window, operand 0']
    %16 = vsyncpa [#allocation3], 0
    %s17 = scalar_lea.sflag [#allocation3], 1
    %18 = vsyncpa %s17, 0
    %19 = vsyncpa [#allocation6], 0
    %s20 = scalar_lea.sflag [#allocation6], 1
    %21 = vsyncpa %s20, 0
    %22 = vsyncpa [#allocation4], 0
    %s23 = scalar_lea.sflag [#allocation4], 1
    %24 = vsyncpa %s23, 0
    loop: start=0, step=1, limit=4
    $region2: #{tpu_custom_call.1} parent=1 // loop_pre_header
      _
    $region3: #{tpu_custom_call.1} parent=1 // loop_header
      %s26 = sphi 0, %s30
      %p27 = scmp.ge.s32.totalorder %s26, 4
      %s34 = sphi 0, %s34
      %s36 = sphi 0, %s34
      %s37 = sphi 0, %s36
      %s51 = sphi 0, %s37
      %s57 = sphi 0, %s59
      %s60 = sphi 0, %s57
      %s61 = sphi 0, %s60
      %s77 = sphi 0, %s61
      %s83 = sphi 0, %s85
      %s86 = sphi 0, %s83
      %s87 = sphi 0, %s86
      %s103 = sphi 0, %s87
      %s107 = sphi 0, %s107
      %s109 = sphi 0, %s107
      %s110 = sphi 0, %s109
      %s124 = sphi 0, %s110
      %s128 = sphi 0, %s128
      %s130 = sphi 0, %s128
      %s131 = sphi 0, %s130
      %s145 = sphi 0, %s131
      %s149 = sphi 0, %s149
      %s151 = sphi 0, %s149
      %s152 = sphi 0, %s151
      %s166 = sphi 0, %s152
      %s170 = sphi 0, %s170
      %s172 = sphi 0, %s170
      %s173 = sphi 0, %s172
      %s187 = sphi 0, %s173
      %s191 = sphi 0, %s191
      %s193 = sphi 0, %s191
      %s194 = sphi 0, %s193
      %s208 = sphi 0, %s194
      %s212 = sphi 0, %s212
      %s214 = sphi 0, %s212
      %s215 = sphi 0, %s214
      %s229 = sphi 0, %s215
      %s233 = sphi 0, %s233
      %s235 = sphi 0, %s233
      %s236 = sphi 0, %s235
      %s250 = sphi 0, %s236
      %s254 = sphi 0, %s254
      %s256 = sphi 0, %s254
      %s257 = sphi 0, %s256
      %s271 = sphi 0, %s257
      %s277 = sphi 0, %s279
      %s280 = sphi 0, %s277
      %s281 = sphi 0, %s280
      %s297 = sphi 0, %s281
    $region4: #{tpu_custom_call.1} parent=1 // loop_header_branch
      %29 = sbr.rel (%p27) target = $region8
    $region5: #{tpu_custom_call.1} parent=1 // loop_body
      %s31 = ssub.s32 %s26, 1
      %s32 = ssub.s32 %s26, 2
      %s33 = sadd.s32 %s26, 1
      %s35 = sadd.s32 %s34, 1
      %p38 = scmp.eq.s32.totalorder %s26, 1
      %p39 = scmp.ne.s32.totalorder %s34, %s36
      %p40 = scmp.eq.s32.totalorder %s26, 0
      %p41 = por %p39, %p40
      %p42 = scmp.ne.s32.totalorder %s34, %s36
      %p43 = scmp.eq.s32.totalorder %s31, 1
      %p44 = por %p42, %p43
      %p45 = scmp.ne.s32.totalorder %s36, %s37
      %p46 = scmp.eq.s32.totalorder %s31, 0
      %p47 = por %p45, %p46
      %p48 = scmp.ne.s32.totalorder %s36, %s37
      %p49 = scmp.eq.s32.totalorder %s32, 1
      %p50 = por %p48, %p49
      %p52 = scmp.ne.s32.totalorder %s37, %s51
      %p53 = scmp.eq.s32.totalorder %s32, 0
      %p54 = por %p52, %p53
      %s55 = ssub.s32 %s26, %s33
      %p56 = scmp.eq.s32.totalorder %s55, 0
      %s58 = sadd.s32 %s57, 1
      %s59 = scalar_select %p56, %s57, %s58
      %p62 = pneg %p56
      %p63 = scmp.eq.s32.totalorder %s26, 1
      %p64 = por %p62, %p63
      %p65 = scmp.ne.s32.totalorder %s57, %s60
      %p66 = scmp.eq.s32.totalorder %s26, 0
      %p67 = por %p65, %p66
      %p68 = scmp.ne.s32.totalorder %s57, %s60
      %p69 = scmp.eq.s32.totalorder %s31, 1
      %p70 = por %p68, %p69
      %p71 = scmp.ne.s32.totalorder %s60, %s61
      %p72 = scmp.eq.s32.totalorder %s31, 0
      %p73 = por %p71, %p72
      %p74 = scmp.ne.s32.totalorder %s60, %s61
      %p75 = scmp.eq.s32.totalorder %s32, 1
      %p76 = por %p74, %p75
      %p78 = scmp.ne.s32.totalorder %s61, %s77
      %p79 = scmp.eq.s32.totalorder %s32, 0
      %p80 = por %p78, %p79
      %s81 = ssub.s32 %s26, %s33
      %p82 = scmp.eq.s32.totalorder %s81, 0
      %s84 = sadd.s32 %s83, 1
      %s85 = scalar_select %p82, %s83, %s84
      %p88 = pneg %p82
      %p89 = scmp.eq.s32.totalorder %s26, 1
      %p90 = por %p88, %p89
      %p91 = scmp.ne.s32.totalorder %s83, %s86
      %p92 = scmp.eq.s32.totalorder %s26, 0
      %p93 = por %p91, %p92
      %p94 = scmp.ne.s32.totalorder %s83, %s86
      %p95 = scmp.eq.s32.totalorder %s31, 1
      %p96 = por %p94, %p95
      %p97 = scmp.ne.s32.totalorder %s86, %s87
      %p98 = scmp.eq.s32.totalorder %s31, 0
      %p99 = por %p97, %p98
      %p100 = scmp.ne.s32.totalorder %s86, %s87
      %p101 = scmp.eq.s32.totalorder %s32, 1
      %p102 = por %p100, %p101
      %p104 = scmp.ne.s32.totalorder %s87, %s103
      %p105 = scmp.eq.s32.totalorder %s32, 0
      %p106 = por %p104, %p105
      %s108 = sadd.s32 %s107, 1
      %p111 = scmp.eq.s32.totalorder %s26, 1
      %p112 = scmp.ne.s32.totalorder %s107, %s109
      %p113 = scmp.eq.s32.totalorder %s26, 0
      %p114 = por %p112, %p113
      %p115 = scmp.ne.s32.totalorder %s107, %s109
      %p116 = scmp.eq.s32.totalorder %s31, 1
      %p117 = por %p115, %p116
      %p118 = scmp.ne.s32.totalorder %s109, %s110
      %p119 = scmp.eq.s32.totalorder %s31, 0
      %p120 = por %p118, %p119
      %p121 = scmp.ne.s32.totalorder %s109, %s110
      %p122 = scmp.eq.s32.totalorder %s32, 1
      %p123 = por %p121, %p122
      %p125 = scmp.ne.s32.totalorder %s110, %s124
      %p126 = scmp.eq.s32.totalorder %s32, 0
      %p127 = por %p125, %p126
      %s129 = sadd.s32 %s128, 1
      %p132 = scmp.eq.s32.totalorder %s26, 1
      %p133 = scmp.ne.s32.totalorder %s128, %s130
      %p134 = scmp.eq.s32.totalorder %s26, 0
      %p135 = por %p133, %p134
      %p136 = scmp.ne.s32.totalorder %s128, %s130
      %p137 = scmp.eq.s32.totalorder %s31, 1
      %p138 = por %p136, %p137
      %p139 = scmp.ne.s32.totalorder %s130, %s131
      %p140 = scmp.eq.s32.totalorder %s31, 0
      %p141 = por %p139, %p140
      %p142 = scmp.ne.s32.totalorder %s130, %s131
      %p143 = scmp.eq.s32.totalorder %s32, 1
      %p144 = por %p142, %p143
      %p146 = scmp.ne.s32.totalorder %s131, %s145
      %p147 = scmp.eq.s32.totalorder %s32, 0
      %p148 = por %p146, %p147
      %s150 = sadd.s32 %s149, 1
      %p153 = scmp.eq.s32.totalorder %s26, 1
      %p154 = scmp.ne.s32.totalorder %s149, %s151
      %p155 = scmp.eq.s32.totalorder %s26, 0
      %p156 = por %p154, %p155
      %p157 = scmp.ne.s32.totalorder %s149, %s151
      %p158 = scmp.eq.s32.totalorder %s31, 1
      %p159 = por %p157, %p158
      %p160 = scmp.ne.s32.totalorder %s151, %s152
      %p161 = scmp.eq.s32.totalorder %s31, 0
      %p162 = por %p160, %p161
      %p163 = scmp.ne.s32.totalorder %s151, %s152
      %p164 = scmp.eq.s32.totalorder %s32, 1
      %p165 = por %p163, %p164
      %p167 = scmp.ne.s32.totalorder %s152, %s166
      %p168 = scmp.eq.s32.totalorder %s32, 0
      %p169 = por %p167, %p168
      %s171 = sadd.s32 %s170, 1
      %p174 = scmp.eq.s32.totalorder %s26, 1
      %p175 = scmp.ne.s32.totalorder %s170, %s172
      %p176 = scmp.eq.s32.totalorder %s26, 0
      %p177 = por %p175, %p176
      %p178 = scmp.ne.s32.totalorder %s170, %s172
      %p179 = scmp.eq.s32.totalorder %s31, 1
      %p180 = por %p178, %p179
      %p181 = scmp.ne.s32.totalorder %s172, %s173
      %p182 = scmp.eq.s32.totalorder %s31, 0
      %p183 = por %p181, %p182
      %p184 = scmp.ne.s32.totalorder %s172, %s173
      %p185 = scmp.eq.s32.totalorder %s32, 1
      %p186 = por %p184, %p185
      %p188 = scmp.ne.s32.totalorder %s173, %s187
      %p189 = scmp.eq.s32.totalorder %s32, 0
      %p190 = por %p188, %p189
      %s192 = sadd.s32 %s191, 1
      %p195 = scmp.eq.s32.totalorder %s26, 1
      %p196 = scmp.ne.s32.totalorder %s191, %s193
      %p197 = scmp.eq.s32.totalorder %s26, 0
      %p198 = por %p196, %p197
      %p199 = scmp.ne.s32.totalorder %s191, %s193
      %p200 = scmp.eq.s32.totalorder %s31, 1
      %p201 = por %p199, %p200
      %p202 = scmp.ne.s32.totalorder %s193, %s194
      %p203 = scmp.eq.s32.totalorder %s31, 0
      %p204 = por %p202, %p203
      %p205 = scmp.ne.s32.totalorder %s193, %s194
      %p206 = scmp.eq.s32.totalorder %s32, 1
      %p207 = por %p205, %p206
      %p209 = scmp.ne.s32.totalorder %s194, %s208
      %p210 = scmp.eq.s32.totalorder %s32, 0
      %p211 = por %p209, %p210
      %s213 = sadd.s32 %s212, 1
      %p216 = scmp.eq.s32.totalorder %s26, 1
      %p217 = scmp.ne.s32.totalorder %s212, %s214
      %p218 = scmp.eq.s32.totalorder %s26, 0
      %p219 = por %p217, %p218
      %p220 = scmp.ne.s32.totalorder %s212, %s214
      %p221 = scmp.eq.s32.totalorder %s31, 1
      %p222 = por %p220, %p221
      %p223 = scmp.ne.s32.totalorder %s214, %s215
      %p224 = scmp.eq.s32.totalorder %s31, 0
      %p225 = por %p223, %p224
      %p226 = scmp.ne.s32.totalorder %s214, %s215
      %p227 = scmp.eq.s32.totalorder %s32, 1
      %p228 = por %p226, %p227
      %p230 = scmp.ne.s32.totalorder %s215, %s229
      %p231 = scmp.eq.s32.totalorder %s32, 0
      %p232 = por %p230, %p231
      %s234 = sadd.s32 %s233, 1
      %p237 = scmp.eq.s32.totalorder %s26, 1
      %p238 = scmp.ne.s32.totalorder %s233, %s235
      %p239 = scmp.eq.s32.totalorder %s26, 0
      %p240 = por %p238, %p239
      %p241 = scmp.ne.s32.totalorder %s233, %s235
      %p242 = scmp.eq.s32.totalorder %s31, 1
      %p243 = por %p241, %p242
      %p244 = scmp.ne.s32.totalorder %s235, %s236
      %p245 = scmp.eq.s32.totalorder %s31, 0
      %p246 = por %p244, %p245
      %p247 = scmp.ne.s32.totalorder %s235, %s236
      %p248 = scmp.eq.s32.totalorder %s32, 1
      %p249 = por %p247, %p248
      %p251 = scmp.ne.s32.totalorder %s236, %s250
      %p252 = scmp.eq.s32.totalorder %s32, 0
      %p253 = por %p251, %p252
      %s255 = sadd.s32 %s254, 1
      %p258 = scmp.eq.s32.totalorder %s26, 1
      %p259 = scmp.ne.s32.totalorder %s254, %s256
      %p260 = scmp.eq.s32.totalorder %s26, 0
      %p261 = por %p259, %p260
      %p262 = scmp.ne.s32.totalorder %s254, %s256
      %p263 = scmp.eq.s32.totalorder %s31, 1
      %p264 = por %p262, %p263
      %p265 = scmp.ne.s32.totalorder %s256, %s257
      %p266 = scmp.eq.s32.totalorder %s31, 0
      %p267 = por %p265, %p266
      %p268 = scmp.ne.s32.totalorder %s256, %s257
      %p269 = scmp.eq.s32.totalorder %s32, 1
      %p270 = por %p268, %p269
      %p272 = scmp.ne.s32.totalorder %s257, %s271
      %p273 = scmp.eq.s32.totalorder %s32, 0
      %p274 = por %p272, %p273
      %s275 = ssub.s32 %s26, %s33
      %p276 = scmp.eq.s32.totalorder %s275, 0
      %s278 = sadd.s32 %s277, 1
      %s279 = scalar_select %p276, %s277, %s278
      %p282 = pneg %p276
      %p283 = scmp.eq.s32.totalorder %s26, 1
      %p284 = por %p282, %p283
      %p285 = scmp.ne.s32.totalorder %s277, %s280
      %p286 = scmp.eq.s32.totalorder %s26, 0
      %p287 = por %p285, %p286
      %p288 = scmp.ne.s32.totalorder %s277, %s280
      %p289 = scmp.eq.s32.totalorder %s31, 1
      %p290 = por %p288, %p289
      %p291 = scmp.ne.s32.totalorder %s280, %s281
      %p292 = scmp.eq.s32.totalorder %s31, 0
      %p293 = por %p291, %p292
      %p294 = scmp.ne.s32.totalorder %s280, %s281
      %p295 = scmp.eq.s32.totalorder %s32, 1
      %p296 = por %p294, %p295
      %p298 = scmp.ne.s32.totalorder %s281, %s297
      %p299 = scmp.eq.s32.totalorder %s32, 0
      %p300 = por %p298, %p299
      %p301 = scmp.le.s32.totalorder 1, %s26
      %p302 = scmp.lt.s32.totalorder %s26, 3
      %p303 = pnand %p301, %p302
      %p304 = pneg %p303
      // Predicated region
      $region9: #{tpu_custom_call.1} parent=5 // pred_check
        _
      $region10: #{tpu_custom_call.1} parent=5 // pred_check_branch
        %306 = sbr.rel (%p303) target = $region12
      $region11: #{tpu_custom_call.1} parent=5 // pred_region
        %s307 = ssub.s32 %s26, 1
        // Predicated region
        $region13: #{tpu_custom_call.1} parent=11 // pred_check
          %p308 = pneg %p47
        $region14: #{tpu_custom_call.1} parent=11 // pred_check_branch
          %310 = sbr.rel (%p308) target = $region16
        $region15: #{tpu_custom_call.1} parent=11 // pred_region
          _
        $region16: #{tpu_custom_call.1} parent=11 // pred_fallthru
          _
        // Predicated region
        $region17: #{tpu_custom_call.1} parent=11 // pred_check
          %p311 = pneg %p120
        $region18: #{tpu_custom_call.1} parent=11 // pred_check_branch
          %313 = sbr.rel (%p311) target = $region20
        $region19: #{tpu_custom_call.1} parent=11 // pred_region
          %s315 = ssub.s32 2048, 2048
          %316 = vsyncadd [#allocation6], %s315
          %s317 = sshll.u32 [#allocation7], 4
          %s318 = int_to_ptr.vmem [resolvable:$true] %s317
          %323 = dma.hbm_to_vmem [thread:$0]  %s3, 2048, %s318, [#allocation6], 256, 256, 16
        $region20: #{tpu_custom_call.1} parent=11 // pred_fallthru
          _
        // Predicated region
        $region21: #{tpu_custom_call.1} parent=11 // pred_check
          %p324 = pneg %p141
        $region22: #{tpu_custom_call.1} parent=11 // pred_check_branch
          %326 = sbr.rel (%p324) target = $region24
        $region23: #{tpu_custom_call.1} parent=11 // pred_region
          _
        $region24: #{tpu_custom_call.1} parent=11 // pred_fallthru
          _
        // Predicated region
        $region25: #{tpu_custom_call.1} parent=11 // pred_check
          %p327 = pneg %p162
        $region26: #{tpu_custom_call.1} parent=11 // pred_check_branch
          %329 = sbr.rel (%p327) target = $region28
        $region27: #{tpu_custom_call.1} parent=11 // pred_region
          _
        $region28: #{tpu_custom_call.1} parent=11 // pred_fallthru
          _
        // Predicated region
        $region29: #{tpu_custom_call.1} parent=11 // pred_check
          %p330 = pneg %p183
        $region30: #{tpu_custom_call.1} parent=11 // pred_check_branch
          %332 = sbr.rel (%p330) target = $region32
        $region31: #{tpu_custom_call.1} parent=11 // pred_region
          _
        $region32: #{tpu_custom_call.1} parent=11 // pred_fallthru
          _
        // Predicated region
        $region33: #{tpu_custom_call.1} parent=11 // pred_check
          %p333 = pneg %p204
        $region34: #{tpu_custom_call.1} parent=11 // pred_check_branch
          %335 = sbr.rel (%p333) target = $region36
        $region35: #{tpu_custom_call.1} parent=11 // pred_region
          _
        $region36: #{tpu_custom_call.1} parent=11 // pred_fallthru
          _
        // Predicated region
        $region37: #{tpu_custom_call.1} parent=11 // pred_check
          %p336 = pneg %p225
        $region38: #{tpu_custom_call.1} parent=11 // pred_check_branch
          %338 = sbr.rel (%p336) target = $region40
        $region39: #{tpu_custom_call.1} parent=11 // pred_region
          _
        $region40: #{tpu_custom_call.1} parent=11 // pred_fallthru
          _
        // Predicated region
        $region41: #{tpu_custom_call.1} parent=11 // pred_check
          %p339 = pneg %p246
        $region42: #{tpu_custom_call.1} parent=11 // pred_check_branch
          %341 = sbr.rel (%p339) target = $region44
        $region43: #{tpu_custom_call.1} parent=11 // pred_region
          _
        $region44: #{tpu_custom_call.1} parent=11 // pred_fallthru
          _
        // Predicated region
        $region45: #{tpu_custom_call.1} parent=11 // pred_check
          %p342 = pneg %p267
        $region46: #{tpu_custom_call.1} parent=11 // pred_check_branch
          %344 = sbr.rel (%p342) target = $region48
        $region47: #{tpu_custom_call.1} parent=11 // pred_region
          _
        $region48: #{tpu_custom_call.1} parent=11 // pred_fallthru
          _
      $region12: #{tpu_custom_call.1} parent=5 // pred_fallthru
        _
      %p345 = scmp.lt.s32.totalorder %s26, 2
      // Predicated region
      $region49: #{tpu_custom_call.1} parent=5 // pred_check
        %p346 = pneg %p345
      $region50: #{tpu_custom_call.1} parent=5 // pred_check_branch
        %348 = sbr.rel (%p346) target = $region52
      $region51: #{tpu_custom_call.1} parent=5 // pred_region
        // Predicated region
        $region53: #{tpu_custom_call.1} parent=51 // pred_check
          %p349 = pneg %p67
        $region54: #{tpu_custom_call.1} parent=51 // pred_check_branch
          %351 = sbr.rel (%p349) target = $region56
        $region55: #{tpu_custom_call.1} parent=51 // pred_region
          %s352 = sand.u32 %s57, 1
          %s353 = scalar_lea.sflag [#allocation3], %s352
          %s354 = sand.u32 %s57, 1
          %s355 = smul.addr %s354, 16
          %s356 = scalar_lea.vmem [#allocation2], %s355
          %s358 = ssub.s32 256, 256
          %359 = vsyncadd %s353, %s358
          %s360 = smul.addr %s26, 2
          %s361 = smul.addr %s360, 128
          %s362 = scalar_lea.hbm %s1, %s361
          %s364 = sshll.u32 %s356, 4
          %s365 = int_to_ptr.vmem [resolvable:$true] %s364
          %367 = dma.hbm_to_vmem [thread:$0]  %s362, 256, %s365, %s353
        $region56: #{tpu_custom_call.1} parent=51 // pred_fallthru
          _
        // Predicated region
        $region57: #{tpu_custom_call.1} parent=51 // pred_check
          %p368 = pneg %p93
        $region58: #{tpu_custom_call.1} parent=51 // pred_check_branch
          %370 = sbr.rel (%p368) target = $region60
        $region59: #{tpu_custom_call.1} parent=51 // pred_region
          %s371 = sand.u32 %s26, 1
          %s372 = scalar_lea.sflag [#allocation6], %s371
          %s373 = sand.u32 %s83, 1
          %s374 = smul.addr %s373, 8
          %s375 = scalar_lea.vmem [#allocation5], %s374
          %s377 = ssub.s32 128, 128
          %378 = vsyncadd %s372, %s377
          %s379 = smul.addr %s26, 128
          %s380 = scalar_lea.hbm %s2, %s379
          %s382 = sshll.u32 %s375, 4
          %s383 = int_to_ptr.vmem [resolvable:$true] %s382
          %385 = dma.hbm_to_vmem [thread:$0]  %s380, 128, %s383, %s372
        $region60: #{tpu_custom_call.1} parent=51 // pred_fallthru
          _
      $region52: #{tpu_custom_call.1} parent=5 // pred_fallthru
        _
      %p386 = scmp.le.s32.totalorder 1, %s26
      %p387 = scmp.lt.s32.totalorder %s26, 3
      %p388 = pnand %p386, %p387
      %p389 = pneg %p388
      // Predicated region
      $region61: #{tpu_custom_call.1} parent=5 // pred_check
        _
      $region62: #{tpu_custom_call.1} parent=5 // pred_check_branch
        %391 = sbr.rel (%p388) target = $region64
      $region63: #{tpu_custom_call.1} parent=5 // pred_region
        %s392 = ssub.s32 %s26, 1
        %s393 = sand.u32 %s60, 1
        %s394 = scalar_lea.sflag [#allocation3], %s393
        %s395 = sand.u32 %s60, 1
        %s396 = smul.addr %s395, 16
        %s397 = scalar_lea.vmem [#allocation2], %s396
        // Predicated region
        $region65: #{tpu_custom_call.1} parent=63 // pred_check
          %p398 = pneg %p73
        $region66: #{tpu_custom_call.1} parent=63 // pred_check_branch
          %400 = sbr.rel (%p398) target = $region68
        $region67: #{tpu_custom_call.1} parent=63 // pred_region
          %401 = dma.done %s394, 256
        $region68: #{tpu_custom_call.1} parent=63 // pred_fallthru
          _
        %s402 = sand.u32 %s31, 1
        %s403 = scalar_lea.sflag [#allocation6], %s402
        %s404 = sand.u32 %s86, 1
        %s405 = smul.addr %s404, 8
        %s406 = scalar_lea.vmem [#allocation5], %s405
        // Predicated region
        $region69: #{tpu_custom_call.1} parent=63 // pred_check
          %p407 = pneg %p99
        $region70: #{tpu_custom_call.1} parent=63 // pred_check_branch
          %409 = sbr.rel (%p407) target = $region72
        $region71: #{tpu_custom_call.1} parent=63 // pred_region
          %410 = dma.done %s403, 128
        $region72: #{tpu_custom_call.1} parent=63 // pred_fallthru
          _
        // Predicated region
        $region73: #{tpu_custom_call.1} parent=63 // pred_check
          %p411 = pneg %p120
        $region74: #{tpu_custom_call.1} parent=63 // pred_check_branch
          %413 = sbr.rel (%p411) target = $region76
        $region75: #{tpu_custom_call.1} parent=63 // pred_region
          %414 = dma.done [#allocation6], 2048
        $region76: #{tpu_custom_call.1} parent=63 // pred_fallthru
          _
        %p415 = pneg %p47
        %p416 = pneg %p44
        %s417 = sand.u32 %s60, 1
        %s418 = scalar_lea.sflag [#allocation3], %s417
        %s419 = sand.u32 %s60, 1
        %s420 = smul.addr %s419, 16
        %s421 = scalar_lea.vmem [#allocation2], %s420
        %p422 = pneg %p73
        %p423 = pneg %p70
        %s424 = sand.u32 %s31, 1
        %s425 = scalar_lea.sflag [#allocation6], %s424
        %s426 = sand.u32 %s86, 1
        %s427 = smul.addr %s426, 8
        %s428 = scalar_lea.vmem [#allocation5], %s427
        %p429 = pneg %p99
        %p430 = pneg %p96
        %p431 = pneg %p120
        %p432 = pneg %p117
        %p433 = pneg %p141
        %p434 = pneg %p138
        %p435 = pneg %p162
        %p436 = pneg %p159
        %p437 = pneg %p183
        %p438 = pneg %p180
        %p439 = pneg %p204
        %p440 = pneg %p201
        %p441 = pneg %p225
        %p442 = pneg %p222
        %p443 = pneg %p246
        %p444 = pneg %p243
        %p445 = pneg %p267
        %p446 = pneg %p264
        %p447 = pneg %p293
        %p448 = pneg %p290
        %s449 = sand.u32 %s280, 1
        %s450 = scalar_lea.sflag [#allocation4], %s449
        %s451 = sand.u32 %s280, 1
        %s452 = smul.addr %s451, 8
        %s453 = scalar_lea.vmem [#allocation8], %s452
        %v454 = vld [vmem:[%s0] sm:$0xff]
        %v455 = vld [vmem:[%s0 + $0x8] sm:$0xff]
        %v456 = vld [vmem:[%s0 + $0x10] sm:$0x1]
        %v457 = vld [vmem:[%s0 + $0x18] sm:$0x1]
        %v458 = vld [vmem:[%s406] sm:$0xff]
        %v459 = vld [vmem:[#allocation7] sm:$0xff]
        %v460 = vld [vmem:[#allocation7 + $0x8] sm:$0xff]
        %v461 = vld [vmem:[#allocation7 + $0x10] sm:$0xff]
        %v462 = vld [vmem:[#allocation7 + $0x18] sm:$0xff]
        %v463 = vld [vmem:[#allocation7 + $0x20] sm:$0xff]
        %v464 = vld [vmem:[#allocation7 + $0x28] sm:$0xff]
        %v465 = vld [vmem:[#allocation7 + $0x30] sm:$0xff]
        %v466 = vld [vmem:[#allocation7 + $0x38] sm:$0xff]
        %v467 = vld [vmem:[#allocation7 + $0x40] sm:$0xff]
        %v468 = vld [vmem:[#allocation7 + $0x48] sm:$0xff]
        %v469 = vld [vmem:[#allocation7 + $0x50] sm:$0xff]
        %v470 = vld [vmem:[#allocation7 + $0x58] sm:$0xff]
        %v471 = vld [vmem:[#allocation7 + $0x60] sm:$0xff]
        %v472 = vld [vmem:[#allocation7 + $0x68] sm:$0xff]
        %v473 = vld [vmem:[#allocation7 + $0x70] sm:$0xff]
        %v474 = vld [vmem:[#allocation7 + $0x78] sm:$0xff]
        %vm475 = vcmask 523264
        %v477 = vsel %vm475, %v458, 0
        %479 = vmatprep.subr.mxu0 %v460
        %480 = vmatpush1.msra.mxu0 %v459
        %481 = vmatprep.subr.mxu0 %v462
        %482 = vmatpush1.msra.mxu0 %v461
        %483 = vmatprep.subr.mxu0 %v464
        %484 = vmatpush1.msra.mxu0 %v463
        %485 = vmatprep.subr.mxu0 %v466
        %486 = vmatpush1.msra.mxu0 %v465
        %487 = vmatprep.subr.mxu0 %v468
        %488 = vmatpush1.msra.mxu0 %v467
        %489 = vmatprep.subr.mxu0 %v470
        %490 = vmatpush1.msra.mxu0 %v469
        %491 = vmatprep.subr.mxu0 %v472
        %492 = vmatpush1.msra.mxu0 %v471
        %493 = vmatprep.subr.mxu0 %v474
        %494 = vmatpush1.msra.mxu0 %v473
        %495 = vmatprep.subr.mxu0 0.0
        %496 = vmatpush1.msra.mxu0 0.0
        %497 = vmatprep.subr.mxu0 0.0
        %498 = vmatpush1.msra.mxu0 0.0
        %499 = vmatprep.subr.mxu0 0.0
        %500 = vmatpush1.msra.mxu0 0.0
        %501 = vmatprep.subr.mxu0 0.0
        %502 = vmatpush1.msra.mxu0 0.0
        %503 = vmatprep.subr.mxu0 0.0
        %504 = vmatpush1.msra.mxu0 0.0
        %505 = vmatprep.subr.mxu0 0.0
        %506 = vmatpush1.msra.mxu0 0.0
        %507 = vmatprep.subr.mxu0 0.0
        %508 = vmatpush1.msra.mxu0 0.0
        %509 = vmatprep.subr.mxu0 0.0
        %510 = vmatpush1.msra.mxu0 0.0
        %511 = vmatprep.subr.mxu0 0.0
        %512 = vmatpush1.msra.mxu0 0.0
        %513 = vmatprep.subr.mxu0 0.0
        %514 = vmatpush1.msra.mxu0 0.0
        %515 = vmatprep.subr.mxu0 0.0
        %516 = vmatpush1.msra.mxu0 0.0
        %517 = vmatprep.subr.mxu0 0.0
        %518 = vmatpush1.msra.mxu0 0.0
        %519 = vmatprep.subr.mxu0 0.0
        %520 = vmatpush1.msra.mxu0 0.0
        %521 = vmatprep.subr.mxu0 0.0
        %522 = vmatpush1.msra.mxu0 0.0
        %523 = vmatprep.subr.mxu0 0.0
        %524 = vmatpush1.msra.mxu0 0.0
        %525 = vmatprep.subr.mxu0 0.0
        %526 = vmatpush1.msra.mxu0 0.0
        %527 = vmatprep.subr.mxu0 0.0
        %528 = vmatpush1.msra.mxu0 0.0
        %529 = vmatprep.subr.mxu0 0.0
        %530 = vmatpush1.msra.mxu0 0.0
        %531 = vmatprep.subr.mxu0 0.0
        %532 = vmatpush1.msra.mxu0 0.0
        %533 = vmatprep.subr.mxu0 0.0
        %534 = vmatpush1.msra.mxu0 0.0
        %535 = vmatprep.subr.mxu0 0.0
        %536 = vmatpush1.msra.mxu0 0.0
        %537 = vmatprep.subr.mxu0 0.0
        %538 = vmatpush1.msra.mxu0 0.0
        %539 = vmatprep.subr.mxu0 0.0
        %540 = vmatpush1.msra.mxu0 0.0
        %541 = vmatprep.subr.mxu0 0.0
        %542 = vmatpush1.msra.mxu0 0.0
        %543 = vmatprep.mubr.f32.mxu0 0.0
        %544 = vmatmul.mubr.f32.gmra.mrb[0].mxu0 %v477
        %v545 = vpop.f32.mrb[0].mxu0
        %v546 = vadd.f32 0.0, %v545
        %v547 = vpop.f32.mrb[0].mxu0
        %v548 = vadd.f32 0.0, %v547
        %549 = vdwg.mxu0
        %v550 = vld [vmem:[%s397] sm:$0xff]
        %v551 = vld [vmem:[%s397 + $0x8] sm:$0xff]
        %552 = vrot.lane.b32.xlu0 %v550, 17
        %v553 = vpop.permute.xlu0 %552
        %554 = vrot.lane.b32.xlu0 %v551, 17
        %v555 = vpop.permute.xlu0 %554
        %v556 = vlaneseq
        %v557 = vand.u32 %v556, 127
        %vm558 = vcmp.lt.s32.totalorder %v557, 17
        %v559 = vsel %vm558, %v553, %v555
        %v560 = vsel %vm558, %v555, %v553
        %v561 = vlaneseq
        %v562 = vshrl.u32 %v561, 7
        %v563 = vsub.s32 0, %v562
        %v564 = vrot.slane %v454, %v563
        %v565 = vlaneseq
        %v566 = vshrl.u32 %v565, 7
        %v567 = vsub.s32 0, %v566
        %v568 = vrot.slane %v455, %v567
        %v569 = vmul.f32 %v560, %v564
        %v570 = vmul.f32 %v559, %v568
        %571 = vrot.lane.b32.xlu0 %v550, 16
        %v572 = vpop.permute.xlu0 %571
        %573 = vrot.lane.b32.xlu0 %v551, 16
        %v574 = vpop.permute.xlu0 %573
        %vm575 = vcmp.lt.s32.totalorder %v557, 16
        %v576 = vsel %vm575, %v572, %v574
        %v577 = vsel %vm575, %v574, %v572
        %v578 = vlaneseq
        %v579 = vshrl.u32 %v578, 7
        %v580 = vsub.s32 1, %v579
        %v581 = vrot.slane %v454, %v580
        %v582 = vlaneseq
        %v583 = vshrl.u32 %v582, 7
        %v584 = vsub.s32 1, %v583
        %v585 = vrot.slane %v455, %v584
        %v586 = vmul.f32 %v577, %v581
        %v587 = vmul.f32 %v576, %v585
        %588 = vrot.lane.b32.xlu0 %v550, 15
        %v589 = vpop.permute.xlu0 %588
        %590 = vrot.lane.b32.xlu0 %v551, 15
        %v591 = vpop.permute.xlu0 %590
        %vm592 = vcmp.lt.s32.totalorder %v557, 15
        %v593 = vsel %vm592, %v589, %v591
        %v594 = vsel %vm592, %v591, %v589
        %v595 = vlaneseq
        %v596 = vshrl.u32 %v595, 7
        %v597 = vsub.s32 2, %v596
        %v598 = vrot.slane %v454, %v597
        %v599 = vlaneseq
        %v600 = vshrl.u32 %v599, 7
        %v601 = vsub.s32 2, %v600
        %v602 = vrot.slane %v455, %v601
        %v603 = vmul.f32 %v594, %v598
        %v604 = vmul.f32 %v593, %v602
        %v605 = vld [vmem:[%s4] sm:$0xff]
        %606 = vrot.lane.b32.xlu0 %v550, 1
        %v607 = vpop.permute.xlu0 %606
        %608 = vrot.lane.b32.xlu0 %v551, 1
        %v609 = vpop.permute.xlu0 %608
        %vm610 = vcmp.lt.s32.totalorder %v557, 1
        %v611 = vsel %vm610, %v607, %v609
        %v612 = vsel %vm610, %v609, %v607
        %v613 = vlaneseq
        %v614 = vshrl.u32 %v613, 7
        %v615 = vsub.s32 3, %v614
        %v616 = vrot.slane %v454, %v615
        %v617 = vlaneseq
        %v618 = vshrl.u32 %v617, 7
        %v619 = vsub.s32 3, %v618
        %v620 = vrot.slane %v455, %v619
        %v621 = vmul.f32 %v612, %v616
        %v622 = vmul.f32 %v611, %v620
        %623 = vrot.lane.b32.xlu0 %v550, 127
        %v624 = vpop.permute.xlu0 %623
        %625 = vrot.lane.b32.xlu0 %v551, 127
        %v626 = vpop.permute.xlu0 %625
        %vm627 = vcmp.lt.s32.totalorder %v557, 127
        %v628 = vsel %vm627, %v624, %v626
        %v629 = vsel %vm627, %v626, %v624
        %v630 = vlaneseq
        %v631 = vshrl.u32 %v630, 7
        %v632 = vsub.s32 5, %v631
        %v633 = vrot.slane %v454, %v632
        %v634 = vlaneseq
        %v635 = vshrl.u32 %v634, 7
        %v636 = vsub.s32 5, %v635
        %v637 = vrot.slane %v455, %v636
        %v638 = vmul.f32 %v628, %v633
        %v639 = vmul.f32 %v629, %v637
        %641 = vrot.lane.b32.xlu0 %v605, 104
        %v642 = vpop.permute.xlu0 %641
        %vm643 = vcmask 195584
        %v644 = vsel %vm643, %v642, 0
        %646 = vmatprep.subr.mxu0 %v622
        %647 = vmatpush1.msra.mxu0 %v621
        %648 = vmatprep.subr.mxu0 %v551
        %649 = vmatpush1.msra.mxu0 %v550
        %650 = vmatprep.subr.mxu0 %v639
        %651 = vmatpush1.msra.mxu0 %v638
        %652 = vmatprep.subr.mxu0 0.0
        %653 = vmatpush1.msra.mxu0 0.0
        %654 = vmatprep.subr.mxu0 0.0
        %655 = vmatpush1.msra.mxu0 0.0
        %656 = vmatprep.subr.mxu0 0.0
        %657 = vmatpush1.msra.mxu0 0.0
        %658 = vmatprep.subr.mxu0 0.0
        %659 = vmatpush1.msra.mxu0 0.0
        %660 = vmatprep.subr.mxu0 0.0
        %661 = vmatpush1.msra.mxu0 0.0
        %662 = vmatprep.subr.mxu0 0.0
        %663 = vmatpush1.msra.mxu0 0.0
        %664 = vmatprep.subr.mxu0 0.0
        %665 = vmatpush1.msra.mxu0 0.0
        %666 = vmatprep.subr.mxu0 0.0
        %667 = vmatpush1.msra.mxu0 0.0
        %668 = vmatprep.subr.mxu0 0.0
        %669 = vmatpush1.msra.mxu0 0.0
        %670 = vmatprep.subr.mxu0 0.0
        %671 = vmatpush1.msra.mxu0 0.0
        %672 = vmatprep.subr.mxu0 0.0
        %673 = vmatpush1.msra.mxu0 0.0
        %674 = vmatprep.subr.mxu0 0.0
        %675 = vmatpush1.msra.mxu0 0.0
        %676 = vmatprep.subr.mxu0 0.0
        %677 = vmatpush1.msra.mxu0 0.0
        %678 = vmatprep.subr.mxu0 0.0
        %679 = vmatpush1.msra.mxu0 0.0
        %680 = vmatprep.subr.mxu0 0.0
        %681 = vmatpush1.msra.mxu0 0.0
        %682 = vmatprep.subr.mxu0 0.0
        %683 = vmatpush1.msra.mxu0 0.0
        %684 = vmatprep.subr.mxu0 0.0
        %685 = vmatpush1.msra.mxu0 0.0
        %686 = vmatprep.subr.mxu0 0.0
        %687 = vmatpush1.msra.mxu0 0.0
        %688 = vmatprep.subr.mxu0 0.0
        %689 = vmatpush1.msra.mxu0 0.0
        %690 = vmatprep.subr.mxu0 0.0
        %691 = vmatpush1.msra.mxu0 0.0
        %692 = vmatprep.subr.mxu0 0.0
        %693 = vmatpush1.msra.mxu0 0.0
        %694 = vmatprep.subr.mxu0 0.0
        %695 = vmatpush1.msra.mxu0 0.0
        %696 = vmatprep.subr.mxu0 0.0
        %697 = vmatpush1.msra.mxu0 0.0
        %698 = vmatprep.subr.mxu0 0.0
        %699 = vmatpush1.msra.mxu0 0.0
        %700 = vmatprep.subr.mxu0 0.0
        %701 = vmatpush1.msra.mxu0 0.0
        %702 = vmatprep.subr.mxu0 0.0
        %703 = vmatpush1.msra.mxu0 0.0
        %704 = vmatprep.subr.mxu0 0.0
        %705 = vmatpush1.msra.mxu0 0.0
        %706 = vmatprep.subr.mxu0 0.0
        %707 = vmatpush1.msra.mxu0 0.0
        %708 = vmatprep.subr.mxu0 0.0
        %709 = vmatpush1.msra.mxu0 0.0
        %710 = vmatprep.mubr.f32.mxu0 0.0
        %711 = vmatmul.mubr.f32.gmra.mrb[0].mxu0 %v644
        %v712 = vpop.f32.mrb[0].mxu0
        %v713 = vadd.f32 0.0, %v712
        %v714 = vpop.f32.mrb[0].mxu0
        %v715 = vadd.f32 0.0, %v714
        %716 = vdwg.mxu0
        %v717 = vsel %vm643, %v605, 0
        %719 = vmatprep.subr.mxu0 %v570
        %720 = vmatpush1.msra.mxu0 %v569
        %721 = vmatprep.subr.mxu0 %v587
        %722 = vmatpush1.msra.mxu0 %v586
        %723 = vmatprep.subr.mxu0 %v604
        %724 = vmatpush1.msra.mxu0 %v603
        %725 = vmatprep.subr.mxu0 0.0
        %726 = vmatpush1.msra.mxu0 0.0
        %727 = vmatprep.subr.mxu0 0.0
        %728 = vmatpush1.msra.mxu0 0.0
        %729 = vmatprep.subr.mxu0 0.0
        %730 = vmatpush1.msra.mxu0 0.0
        %731 = vmatprep.subr.mxu0 0.0
        %732 = vmatpush1.msra.mxu0 0.0
        %733 = vmatprep.subr.mxu0 0.0
        %734 = vmatpush1.msra.mxu0 0.0
        %735 = vmatprep.subr.mxu0 0.0
        %736 = vmatpush1.msra.mxu0 0.0
        %737 = vmatprep.subr.mxu0 0.0
        %738 = vmatpush1.msra.mxu0 0.0
        %739 = vmatprep.subr.mxu0 0.0
        %740 = vmatpush1.msra.mxu0 0.0
        %741 = vmatprep.subr.mxu0 0.0
        %742 = vmatpush1.msra.mxu0 0.0
        %743 = vmatprep.subr.mxu0 0.0
        %744 = vmatpush1.msra.mxu0 0.0
        %745 = vmatprep.subr.mxu0 0.0
        %746 = vmatpush1.msra.mxu0 0.0
        %747 = vmatprep.subr.mxu0 0.0
        %748 = vmatpush1.msra.mxu0 0.0
        %749 = vmatprep.subr.mxu0 0.0
        %750 = vmatpush1.msra.mxu0 0.0
        %751 = vmatprep.subr.mxu0 0.0
        %752 = vmatpush1.msra.mxu0 0.0
        %753 = vmatprep.subr.mxu0 0.0
        %754 = vmatpush1.msra.mxu0 0.0
        %755 = vmatprep.subr.mxu0 0.0
        %756 = vmatpush1.msra.mxu0 0.0
        %757 = vmatprep.subr.mxu0 0.0
        %758 = vmatpush1.msra.mxu0 0.0
        %759 = vmatprep.subr.mxu0 0.0
        %760 = vmatpush1.msra.mxu0 0.0
        %761 = vmatprep.subr.mxu0 0.0
        %762 = vmatpush1.msra.mxu0 0.0
        %763 = vmatprep.subr.mxu0 0.0
        %764 = vmatpush1.msra.mxu0 0.0
        %765 = vmatprep.subr.mxu0 0.0
        %766 = vmatpush1.msra.mxu0 0.0
        %767 = vmatprep.subr.mxu0 0.0
        %768 = vmatpush1.msra.mxu0 0.0
        %769 = vmatprep.subr.mxu0 0.0
        %770 = vmatpush1.msra.mxu0 0.0
        %771 = vmatprep.subr.mxu0 0.0
        %772 = vmatpush1.msra.mxu0 0.0
        %773 = vmatprep.subr.mxu0 0.0
        %774 = vmatpush1.msra.mxu0 0.0
        %775 = vmatprep.subr.mxu0 0.0
        %776 = vmatpush1.msra.mxu0 0.0
        %777 = vmatprep.subr.mxu0 0.0
        %778 = vmatpush1.msra.mxu0 0.0
        %779 = vmatprep.subr.mxu0 0.0
        %780 = vmatpush1.msra.mxu0 0.0
        %781 = vmatprep.subr.mxu0 0.0
        %782 = vmatpush1.msra.mxu0 0.0
        %783 = vmatprep.mubr.f32.mxu0 0.0
        %784 = vmatmul.mubr.f32.gmra.mrb[0].mxu0 %v717
        %v785 = vpop.f32.mrb[0].mxu0
        %v786 = vadd.f32 %v713, %v785
        %v787 = vpop.f32.mrb[0].mxu0
        %v788 = vadd.f32 %v715, %v787
        %789 = vdwg.mxu0
        %790 = vrot.lane.b32.xlu0 %v550, 113
        %v791 = vpop.permute.xlu0 %790
        %792 = vrot.lane.b32.xlu0 %v551, 113
        %v793 = vpop.permute.xlu0 %792
        %vm794 = vcmp.lt.s32.totalorder %v557, 113
        %v795 = vsel %vm794, %v791, %v793
        %v796 = vsel %vm794, %v793, %v791
        %v797 = vlaneseq
        %v798 = vshrl.u32 %v797, 7
        %v799 = vsub.s32 6, %v798
        %v800 = vrot.slane %v454, %v799
        %v801 = vlaneseq
        %v802 = vshrl.u32 %v801, 7
        %v803 = vsub.s32 6, %v802
        %v804 = vrot.slane %v455, %v803
        %v805 = vmul.f32 %v795, %v800
        %v806 = vmul.f32 %v796, %v804
        %807 = vrot.lane.b32.xlu0 %v550, 112
        %v808 = vpop.permute.xlu0 %807
        %809 = vrot.lane.b32.xlu0 %v551, 112
        %v810 = vpop.permute.xlu0 %809
        %vm811 = vcmp.lt.s32.totalorder %v557, 112
        %v812 = vsel %vm811, %v808, %v810
        %v813 = vsel %vm811, %v810, %v808
        %v814 = vlaneseq
        %v815 = vshrl.u32 %v814, 7
        %v816 = vsub.s32 7, %v815
        %v817 = vrot.slane %v454, %v816
        %v818 = vlaneseq
        %v819 = vshrl.u32 %v818, 7
        %v820 = vsub.s32 7, %v819
        %v821 = vrot.slane %v455, %v820
        %v822 = vmul.f32 %v812, %v817
        %v823 = vmul.f32 %v813, %v821
        %824 = vrot.lane.b32.xlu0 %v550, 111
        %v825 = vpop.permute.xlu0 %824
        %826 = vrot.lane.b32.xlu0 %v551, 111
        %v827 = vpop.permute.xlu0 %826
        %vm828 = vcmp.lt.s32.totalorder %v557, 111
        %v829 = vsel %vm828, %v825, %v827
        %v830 = vsel %vm828, %v827, %v825
        %v831 = vlaneseq
        %v832 = vshrl.u32 %v831, 7
        %v833 = vsub.s32 0, %v832
        %v834 = vrot.slane %v456, %v833
        %v835 = vlaneseq
        %v836 = vshrl.u32 %v835, 7
        %v837 = vsub.s32 0, %v836
        %v838 = vrot.slane %v457, %v837
        %v839 = vmul.f32 %v829, %v834
        %v840 = vmul.f32 %v830, %v838
        %841 = vrot.lane.b32.xlu0 %v605, 80
        %v842 = vpop.permute.xlu0 %841
        %v843 = vsel %vm643, %v842, 0
        %845 = vmatprep.subr.mxu0 %v806
        %846 = vmatpush1.msra.mxu0 %v805
        %847 = vmatprep.subr.mxu0 %v823
        %848 = vmatpush1.msra.mxu0 %v822
        %849 = vmatprep.subr.mxu0 %v840
        %850 = vmatpush1.msra.mxu0 %v839
        %851 = vmatprep.subr.mxu0 0.0
        %852 = vmatpush1.msra.mxu0 0.0
        %853 = vmatprep.subr.mxu0 0.0
        %854 = vmatpush1.msra.mxu0 0.0
        %855 = vmatprep.subr.mxu0 0.0
        %856 = vmatpush1.msra.mxu0 0.0
        %857 = vmatprep.subr.mxu0 0.0
        %858 = vmatpush1.msra.mxu0 0.0
        %859 = vmatprep.subr.mxu0 0.0
        %860 = vmatpush1.msra.mxu0 0.0
        %861 = vmatprep.subr.mxu0 0.0
        %862 = vmatpush1.msra.mxu0 0.0
        %863 = vmatprep.subr.mxu0 0.0
        %864 = vmatpush1.msra.mxu0 0.0
        %865 = vmatprep.subr.mxu0 0.0
        %866 = vmatpush1.msra.mxu0 0.0
        %867 = vmatprep.subr.mxu0 0.0
        %868 = vmatpush1.msra.mxu0 0.0
        %869 = vmatprep.subr.mxu0 0.0
        %870 = vmatpush1.msra.mxu0 0.0
        %871 = vmatprep.subr.mxu0 0.0
        %872 = vmatpush1.msra.mxu0 0.0
        %873 = vmatprep.subr.mxu0 0.0
        %874 = vmatpush1.msra.mxu0 0.0
        %875 = vmatprep.subr.mxu0 0.0
        %876 = vmatpush1.msra.mxu0 0.0
        %877 = vmatprep.subr.mxu0 0.0
        %878 = vmatpush1.msra.mxu0 0.0
        %879 = vmatprep.subr.mxu0 0.0
        %880 = vmatpush1.msra.mxu0 0.0
        %881 = vmatprep.subr.mxu0 0.0
        %882 = vmatpush1.msra.mxu0 0.0
        %883 = vmatprep.subr.mxu0 0.0
        %884 = vmatpush1.msra.mxu0 0.0
        %885 = vmatprep.subr.mxu0 0.0
        %886 = vmatpush1.msra.mxu0 0.0
        %887 = vmatprep.subr.mxu0 0.0
        %888 = vmatpush1.msra.mxu0 0.0
        %889 = vmatprep.subr.mxu0 0.0
        %890 = vmatpush1.msra.mxu0 0.0
        %891 = vmatprep.subr.mxu0 0.0
        %892 = vmatpush1.msra.mxu0 0.0
        %893 = vmatprep.subr.mxu0 0.0
        %894 = vmatpush1.msra.mxu0 0.0
        %895 = vmatprep.subr.mxu0 0.0
        %896 = vmatpush1.msra.mxu0 0.0
        %897 = vmatprep.subr.mxu0 0.0
        %898 = vmatpush1.msra.mxu0 0.0
        %899 = vmatprep.subr.mxu0 0.0
        %900 = vmatpush1.msra.mxu0 0.0
        %901 = vmatprep.subr.mxu0 0.0
        %902 = vmatpush1.msra.mxu0 0.0
        %903 = vmatprep.subr.mxu0 0.0
        %904 = vmatpush1.msra.mxu0 0.0
        %905 = vmatprep.subr.mxu0 0.0
        %906 = vmatpush1.msra.mxu0 0.0
        %907 = vmatprep.subr.mxu0 0.0
        %908 = vmatpush1.msra.mxu0 0.0
        %909 = vmatprep.mubr.f32.mxu0 0.0
        %910 = vmatmul.mubr.f32.gmra.mrb[0].mxu0 %v843
        %v911 = vpop.f32.mrb[0].mxu0
        %v912 = vadd.f32 0.0, %v911
        %v913 = vpop.f32.mrb[0].mxu0
        %v914 = vadd.f32 0.0, %v913
        %915 = vdwg.mxu0
        %v916 = vadd.f32 %v786, %v912
        %v917 = vadd.f32 %v788, %v914
        %918 = vrot.lane.b32.xlu0 %v546, 17
        %v919 = vpop.permute.xlu0 %918
        %920 = vrot.lane.b32.xlu0 %v548, 17
        %v921 = vpop.permute.xlu0 %920
        %v922 = vsel %vm558, %v919, %v921
        %v923 = vsel %vm558, %v921, %v919
        %v924 = vmul.f32 %v923, %v564
        %v925 = vmul.f32 %v922, %v568
        %926 = vrot.lane.b32.xlu0 %v546, 16
        %v927 = vpop.permute.xlu0 %926
        %928 = vrot.lane.b32.xlu0 %v548, 16
        %v929 = vpop.permute.xlu0 %928
        %v930 = vsel %vm575, %v927, %v929
        %v931 = vsel %vm575, %v929, %v927
        %v932 = vmul.f32 %v931, %v581
        %v933 = vmul.f32 %v930, %v585
        %934 = vrot.lane.b32.xlu0 %v546, 15
        %v935 = vpop.permute.xlu0 %934
        %936 = vrot.lane.b32.xlu0 %v548, 15
        %v937 = vpop.permute.xlu0 %936
        %v938 = vsel %vm592, %v935, %v937
        %v939 = vsel %vm592, %v937, %v935
        %v940 = vmul.f32 %v939, %v598
        %v941 = vmul.f32 %v938, %v602
        %v942 = vld [vmem:[%s5] sm:$0xff]
        %v944 = vsel %vm643, %v942, 0
        %946 = vmatprep.subr.mxu0 %v925
        %947 = vmatpush1.msra.mxu0 %v924
        %948 = vmatprep.subr.mxu0 %v933
        %949 = vmatpush1.msra.mxu0 %v932
        %950 = vmatprep.subr.mxu0 %v941
        %951 = vmatpush1.msra.mxu0 %v940
        %952 = vmatprep.subr.mxu0 0.0
        %953 = vmatpush1.msra.mxu0 0.0
        %954 = vmatprep.subr.mxu0 0.0
        %955 = vmatpush1.msra.mxu0 0.0
        %956 = vmatprep.subr.mxu0 0.0
        %957 = vmatpush1.msra.mxu0 0.0
        %958 = vmatprep.subr.mxu0 0.0
        %959 = vmatpush1.msra.mxu0 0.0
        %960 = vmatprep.subr.mxu0 0.0
        %961 = vmatpush1.msra.mxu0 0.0
        %962 = vmatprep.subr.mxu0 0.0
        %963 = vmatpush1.msra.mxu0 0.0
        %964 = vmatprep.subr.mxu0 0.0
        %965 = vmatpush1.msra.mxu0 0.0
        %966 = vmatprep.subr.mxu0 0.0
        %967 = vmatpush1.msra.mxu0 0.0
        %968 = vmatprep.subr.mxu0 0.0
        %969 = vmatpush1.msra.mxu0 0.0
        %970 = vmatprep.subr.mxu0 0.0
        %971 = vmatpush1.msra.mxu0 0.0
        %972 = vmatprep.subr.mxu0 0.0
        %973 = vmatpush1.msra.mxu0 0.0
        %974 = vmatprep.subr.mxu0 0.0
        %975 = vmatpush1.msra.mxu0 0.0
        %976 = vmatprep.subr.mxu0 0.0
        %977 = vmatpush1.msra.mxu0 0.0
        %978 = vmatprep.subr.mxu0 0.0
        %979 = vmatpush1.msra.mxu0 0.0
        %980 = vmatprep.subr.mxu0 0.0
        %981 = vmatpush1.msra.mxu0 0.0
        %982 = vmatprep.subr.mxu0 0.0
        %983 = vmatpush1.msra.mxu0 0.0
        %984 = vmatprep.subr.mxu0 0.0
        %985 = vmatpush1.msra.mxu0 0.0
        %986 = vmatprep.subr.mxu0 0.0
        %987 = vmatpush1.msra.mxu0 0.0
        %988 = vmatprep.subr.mxu0 0.0
        %989 = vmatpush1.msra.mxu0 0.0
        %990 = vmatprep.subr.mxu0 0.0
        %991 = vmatpush1.msra.mxu0 0.0
        %992 = vmatprep.subr.mxu0 0.0
        %993 = vmatpush1.msra.mxu0 0.0
        %994 = vmatprep.subr.mxu0 0.0
        %995 = vmatpush1.msra.mxu0 0.0
        %996 = vmatprep.subr.mxu0 0.0
        %997 = vmatpush1.msra.mxu0 0.0
        %998 = vmatprep.subr.mxu0 0.0
        %999 = vmatpush1.msra.mxu0 0.0
        %1000 = vmatprep.subr.mxu0 0.0
        %1001 = vmatpush1.msra.mxu0 0.0
        %1002 = vmatprep.subr.mxu0 0.0
        %1003 = vmatpush1.msra.mxu0 0.0
        %1004 = vmatprep.subr.mxu0 0.0
        %1005 = vmatpush1.msra.mxu0 0.0
        %1006 = vmatprep.subr.mxu0 0.0
        %1007 = vmatpush1.msra.mxu0 0.0
        %1008 = vmatprep.subr.mxu0 0.0
        %1009 = vmatpush1.msra.mxu0 0.0
        %1010 = vmatprep.mubr.f32.mxu0 0.0
        %1011 = vmatmul.mubr.f32.gmra.mrb[0].mxu0 %v944
        %v1012 = vpop.f32.mrb[0].mxu0
        %v1013 = vadd.f32 0.0, %v1012
        %v1014 = vpop.f32.mrb[0].mxu0
        %v1015 = vadd.f32 0.0, %v1014
        %1016 = vdwg.mxu0
        %v1017 = vadd.f32 %v916, %v1013
        %v1018 = vadd.f32 %v917, %v1015
        %1019 = vrot.lane.b32.xlu0 %v546, 1
        %v1020 = vpop.permute.xlu0 %1019
        %1021 = vrot.lane.b32.xlu0 %v548, 1
        %v1022 = vpop.permute.xlu0 %1021
        %v1023 = vsel %vm610, %v1020, %v1022
        %v1024 = vsel %vm610, %v1022, %v1020
        %v1025 = vmul.f32 %v1024, %v616
        %v1026 = vmul.f32 %v1023, %v620
        %1027 = vrot.lane.b32.xlu0 %v546, 127
        %v1028 = vpop.permute.xlu0 %1027
        %1029 = vrot.lane.b32.xlu0 %v548, 127
        %v1030 = vpop.permute.xlu0 %1029
        %v1031 = vsel %vm627, %v1028, %v1030
        %v1032 = vsel %vm627, %v1030, %v1028
        %v1033 = vmul.f32 %v1031, %v633
        %v1034 = vmul.f32 %v1032, %v637
        %1035 = vrot.lane.b32.xlu0 %v942, 104
        %v1036 = vpop.permute.xlu0 %1035
        %v1037 = vsel %vm643, %v1036, 0
        %1039 = vmatprep.subr.mxu0 %v1026
        %1040 = vmatpush1.msra.mxu0 %v1025
        %1041 = vmatprep.subr.mxu0 %v548
        %1042 = vmatpush1.msra.mxu0 %v546
        %1043 = vmatprep.subr.mxu0 %v1034
        %1044 = vmatpush1.msra.mxu0 %v1033
        %1045 = vmatprep.subr.mxu0 0.0
        %1046 = vmatpush1.msra.mxu0 0.0
        %1047 = vmatprep.subr.mxu0 0.0
        %1048 = vmatpush1.msra.mxu0 0.0
        %1049 = vmatprep.subr.mxu0 0.0
        %1050 = vmatpush1.msra.mxu0 0.0
        %1051 = vmatprep.subr.mxu0 0.0
        %1052 = vmatpush1.msra.mxu0 0.0
        %1053 = vmatprep.subr.mxu0 0.0
        %1054 = vmatpush1.msra.mxu0 0.0
        %1055 = vmatprep.subr.mxu0 0.0
        %1056 = vmatpush1.msra.mxu0 0.0
        %1057 = vmatprep.subr.mxu0 0.0
        %1058 = vmatpush1.msra.mxu0 0.0
        %1059 = vmatprep.subr.mxu0 0.0
        %1060 = vmatpush1.msra.mxu0 0.0
        %1061 = vmatprep.subr.mxu0 0.0
        %1062 = vmatpush1.msra.mxu0 0.0
        %1063 = vmatprep.subr.mxu0 0.0
        %1064 = vmatpush1.msra.mxu0 0.0
        %1065 = vmatprep.subr.mxu0 0.0
        %1066 = vmatpush1.msra.mxu0 0.0
        %1067 = vmatprep.subr.mxu0 0.0
        %1068 = vmatpush1.msra.mxu0 0.0
        %1069 = vmatprep.subr.mxu0 0.0
        %1070 = vmatpush1.msra.mxu0 0.0
        %1071 = vmatprep.subr.mxu0 0.0
        %1072 = vmatpush1.msra.mxu0 0.0
        %1073 = vmatprep.subr.mxu0 0.0
        %1074 = vmatpush1.msra.mxu0 0.0
        %1075 = vmatprep.subr.mxu0 0.0
        %1076 = vmatpush1.msra.mxu0 0.0
        %1077 = vmatprep.subr.mxu0 0.0
        %1078 = vmatpush1.msra.mxu0 0.0
        %1079 = vmatprep.subr.mxu0 0.0
        %1080 = vmatpush1.msra.mxu0 0.0
        %1081 = vmatprep.subr.mxu0 0.0
        %1082 = vmatpush1.msra.mxu0 0.0
        %1083 = vmatprep.subr.mxu0 0.0
        %1084 = vmatpush1.msra.mxu0 0.0
        %1085 = vmatprep.subr.mxu0 0.0
        %1086 = vmatpush1.msra.mxu0 0.0
        %1087 = vmatprep.subr.mxu0 0.0
        %1088 = vmatpush1.msra.mxu0 0.0
        %1089 = vmatprep.subr.mxu0 0.0
        %1090 = vmatpush1.msra.mxu0 0.0
        %1091 = vmatprep.subr.mxu0 0.0
        %1092 = vmatpush1.msra.mxu0 0.0
        %1093 = vmatprep.subr.mxu0 0.0
        %1094 = vmatpush1.msra.mxu0 0.0
        %1095 = vmatprep.subr.mxu0 0.0
        %1096 = vmatpush1.msra.mxu0 0.0
        %1097 = vmatprep.subr.mxu0 0.0
        %1098 = vmatpush1.msra.mxu0 0.0
        %1099 = vmatprep.subr.mxu0 0.0
        %1100 = vmatpush1.msra.mxu0 0.0
        %1101 = vmatprep.subr.mxu0 0.0
        %1102 = vmatpush1.msra.mxu0 0.0
        %1103 = vmatprep.mubr.f32.mxu0 0.0
        %1104 = vmatmul.mubr.f32.gmra.mrb[0].mxu0 %v1037
        %v1105 = vpop.f32.mrb[0].mxu0
        %v1106 = vadd.f32 0.0, %v1105
        %v1107 = vpop.f32.mrb[0].mxu0
        %v1108 = vadd.f32 0.0, %v1107
        %1109 = vdwg.mxu0
        %v1110 = vadd.f32 %v1017, %v1106
        %v1111 = vadd.f32 %v1018, %v1108
        %1112 = vrot.lane.b32.xlu0 %v546, 113
        %v1113 = vpop.permute.xlu0 %1112
        %1114 = vrot.lane.b32.xlu0 %v548, 113
        %v1115 = vpop.permute.xlu0 %1114
        %v1116 = vsel %vm794, %v1113, %v1115
        %v1117 = vsel %vm794, %v1115, %v1113
        %v1118 = vmul.f32 %v1116, %v800
        %v1119 = vmul.f32 %v1117, %v804
        %1120 = vrot.lane.b32.xlu0 %v546, 112
        %v1121 = vpop.permute.xlu0 %1120
        %1122 = vrot.lane.b32.xlu0 %v548, 112
        %v1123 = vpop.permute.xlu0 %1122
        %v1124 = vsel %vm811, %v1121, %v1123
        %v1125 = vsel %vm811, %v1123, %v1121
        %v1126 = vmul.f32 %v1124, %v817
        %v1127 = vmul.f32 %v1125, %v821
        %1128 = vrot.lane.b32.xlu0 %v546, 111
        %v1129 = vpop.permute.xlu0 %1128
        %1130 = vrot.lane.b32.xlu0 %v548, 111
        %v1131 = vpop.permute.xlu0 %1130
        %v1132 = vsel %vm828, %v1129, %v1131
        %v1133 = vsel %vm828, %v1131, %v1129
        %v1134 = vmul.f32 %v1132, %v834
        %v1135 = vmul.f32 %v1133, %v838
        %1136 = vrot.lane.b32.xlu0 %v942, 80
        %v1137 = vpop.permute.xlu0 %1136
        %v1138 = vsel %vm643, %v1137, 0
        %1140 = vmatprep.subr.mxu0 %v1119
        %1141 = vmatpush1.msra.mxu0 %v1118
        %1142 = vmatprep.subr.mxu0 %v1127
        %1143 = vmatpush1.msra.mxu0 %v1126
        %1144 = vmatprep.subr.mxu0 %v1135
        %1145 = vmatpush1.msra.mxu0 %v1134
        %1146 = vmatprep.subr.mxu0 0.0
        %1147 = vmatpush1.msra.mxu0 0.0
        %1148 = vmatprep.subr.mxu0 0.0
        %1149 = vmatpush1.msra.mxu0 0.0
        %1150 = vmatprep.subr.mxu0 0.0
        %1151 = vmatpush1.msra.mxu0 0.0
        %1152 = vmatprep.subr.mxu0 0.0
        %1153 = vmatpush1.msra.mxu0 0.0
        %1154 = vmatprep.subr.mxu0 0.0
        %1155 = vmatpush1.msra.mxu0 0.0
        %1156 = vmatprep.subr.mxu0 0.0
        %1157 = vmatpush1.msra.mxu0 0.0
        %1158 = vmatprep.subr.mxu0 0.0
        %1159 = vmatpush1.msra.mxu0 0.0
        %1160 = vmatprep.subr.mxu0 0.0
        %1161 = vmatpush1.msra.mxu0 0.0
        %1162 = vmatprep.subr.mxu0 0.0
        %1163 = vmatpush1.msra.mxu0 0.0
        %1164 = vmatprep.subr.mxu0 0.0
        %1165 = vmatpush1.msra.mxu0 0.0
        %1166 = vmatprep.subr.mxu0 0.0
        %1167 = vmatpush1.msra.mxu0 0.0
        %1168 = vmatprep.subr.mxu0 0.0
        %1169 = vmatpush1.msra.mxu0 0.0
        %1170 = vmatprep.subr.mxu0 0.0
        %1171 = vmatpush1.msra.mxu0 0.0
        %1172 = vmatprep.subr.mxu0 0.0
        %1173 = vmatpush1.msra.mxu0 0.0
        %1174 = vmatprep.subr.mxu0 0.0
        %1175 = vmatpush1.msra.mxu0 0.0
        %1176 = vmatprep.subr.mxu0 0.0
        %1177 = vmatpush1.msra.mxu0 0.0
        %1178 = vmatprep.subr.mxu0 0.0
        %1179 = vmatpush1.msra.mxu0 0.0
        %1180 = vmatprep.subr.mxu0 0.0
        %1181 = vmatpush1.msra.mxu0 0.0
        %1182 = vmatprep.subr.mxu0 0.0
        %1183 = vmatpush1.msra.mxu0 0.0
        %1184 = vmatprep.subr.mxu0 0.0
        %1185 = vmatpush1.msra.mxu0 0.0
        %1186 = vmatprep.subr.mxu0 0.0
        %1187 = vmatpush1.msra.mxu0 0.0
        %1188 = vmatprep.subr.mxu0 0.0
        %1189 = vmatpush1.msra.mxu0 0.0
        %1190 = vmatprep.subr.mxu0 0.0
        %1191 = vmatpush1.msra.mxu0 0.0
        %1192 = vmatprep.subr.mxu0 0.0
        %1193 = vmatpush1.msra.mxu0 0.0
        %1194 = vmatprep.subr.mxu0 0.0
        %1195 = vmatpush1.msra.mxu0 0.0
        %1196 = vmatprep.subr.mxu0 0.0
        %1197 = vmatpush1.msra.mxu0 0.0
        %1198 = vmatprep.subr.mxu0 0.0
        %1199 = vmatpush1.msra.mxu0 0.0
        %1200 = vmatprep.subr.mxu0 0.0
        %1201 = vmatpush1.msra.mxu0 0.0
        %1202 = vmatprep.subr.mxu0 0.0
        %1203 = vmatpush1.msra.mxu0 0.0
        %1204 = vmatprep.mubr.f32.mxu0 0.0
        %1205 = vmatmul.mubr.f32.gmra.mrb[0].mxu0 %v1138
        %v1206 = vpop.f32.mrb[0].mxu0
        %v1207 = vadd.f32 0.0, %v1206
        %v1208 = vpop.f32.mrb[0].mxu0
        %v1209 = vadd.f32 0.0, %v1208
        %1210 = vdwg.mxu0
        %v1211 = vadd.f32 %v1110, %v1207
        %v1212 = vadd.f32 %v1111, %v1209
        %v1213 = vld [vmem:[%s6] sm:$0xff]
        %1215 = vset.pattern.permute.xlu0 0
        %1216 = vperm.xlu0 %1215, %v1213
        %v1217 = vpop.permute.xlu0 %1216
        %v1219 = vmul.f32 %v1211, %v1217
        %v1220 = vmul.f32 %v1212, %v1217
        %v1221 = vld [vmem:[%s7] sm:$0xff]
        %1223 = vset.pattern.permute.xlu0 0
        %1224 = vperm.xlu0 %1223, %v1221
        %v1225 = vpop.permute.xlu0 %1224
        %v1227 = vadd.f32 %v1219, %v1225
        %v1228 = vadd.f32 %v1220, %v1225
        %v1229 = vmax.f32 %v1227, 0.0
        %v1230 = vmax.f32 %v1228, 0.0
        %1231 = vrot.lane.b32.xlu0 %v1229, 17
        %v1232 = vpop.permute.xlu0 %1231
        %1233 = vrot.lane.b32.xlu0 %v1230, 17
        %v1234 = vpop.permute.xlu0 %1233
        %v1235 = vsel %vm558, %v1232, %v1234
        %v1236 = vsel %vm558, %v1234, %v1232
        %v1237 = vmul.f32 %v1236, %v564
        %v1238 = vmul.f32 %v1235, %v568
        %1239 = vrot.lane.b32.xlu0 %v1229, 16
        %v1240 = vpop.permute.xlu0 %1239
        %1241 = vrot.lane.b32.xlu0 %v1230, 16
        %v1242 = vpop.permute.xlu0 %1241
        %v1243 = vsel %vm575, %v1240, %v1242
        %v1244 = vsel %vm575, %v1242, %v1240
        %v1245 = vmul.f32 %v1244, %v581
        %v1246 = vmul.f32 %v1243, %v585
        %1247 = vrot.lane.b32.xlu0 %v1229, 15
        %v1248 = vpop.permute.xlu0 %1247
        %1249 = vrot.lane.b32.xlu0 %v1230, 15
        %v1250 = vpop.permute.xlu0 %1249
        %v1251 = vsel %vm592, %v1248, %v1250
        %v1252 = vsel %vm592, %v1250, %v1248
        %v1253 = vmul.f32 %v1252, %v598
        %v1254 = vmul.f32 %v1251, %v602
        %v1255 = vld [vmem:[%s8] sm:$0xff]
        %1256 = vrot.lane.b32.xlu0 %v1229, 1
        %v1257 = vpop.permute.xlu0 %1256
        %1258 = vrot.lane.b32.xlu0 %v1230, 1
        %v1259 = vpop.permute.xlu0 %1258
        %v1260 = vsel %vm610, %v1257, %v1259
        %v1261 = vsel %vm610, %v1259, %v1257
        %v1262 = vmul.f32 %v1261, %v616
        %v1263 = vmul.f32 %v1260, %v620
        %1264 = vrot.lane.b32.xlu0 %v1229, 127
        %v1265 = vpop.permute.xlu0 %1264
        %1266 = vrot.lane.b32.xlu0 %v1230, 127
        %v1267 = vpop.permute.xlu0 %1266
        %v1268 = vsel %vm627, %v1265, %v1267
        %v1269 = vsel %vm627, %v1267, %v1265
        %v1270 = vmul.f32 %v1268, %v633
        %v1271 = vmul.f32 %v1269, %v637
        %1273 = vrot.lane.b32.xlu0 %v1255, 104
        %v1274 = vpop.permute.xlu0 %1273
        %v1275 = vsel %vm643, %v1274, 0
        %1277 = vmatprep.subr.mxu0 %v1263
        %1278 = vmatpush1.msra.mxu0 %v1262
        %1279 = vmatprep.subr.mxu0 %v1230
        %1280 = vmatpush1.msra.mxu0 %v1229
        %1281 = vmatprep.subr.mxu0 %v1271
        %1282 = vmatpush1.msra.mxu0 %v1270
        %1283 = vmatprep.subr.mxu0 0.0
        %1284 = vmatpush1.msra.mxu0 0.0
        %1285 = vmatprep.subr.mxu0 0.0
        %1286 = vmatpush1.msra.mxu0 0.0
        %1287 = vmatprep.subr.mxu0 0.0
        %1288 = vmatpush1.msra.mxu0 0.0
        %1289 = vmatprep.subr.mxu0 0.0
        %1290 = vmatpush1.msra.mxu0 0.0
        %1291 = vmatprep.subr.mxu0 0.0
        %1292 = vmatpush1.msra.mxu0 0.0
        %1293 = vmatprep.subr.mxu0 0.0
        %1294 = vmatpush1.msra.mxu0 0.0
        %1295 = vmatprep.subr.mxu0 0.0
        %1296 = vmatpush1.msra.mxu0 0.0
        %1297 = vmatprep.subr.mxu0 0.0
        %1298 = vmatpush1.msra.mxu0 0.0
        %1299 = vmatprep.subr.mxu0 0.0
        %1300 = vmatpush1.msra.mxu0 0.0
        %1301 = vmatprep.subr.mxu0 0.0
        %1302 = vmatpush1.msra.mxu0 0.0
        %1303 = vmatprep.subr.mxu0 0.0
        %1304 = vmatpush1.msra.mxu0 0.0
        %1305 = vmatprep.subr.mxu0 0.0
        %1306 = vmatpush1.msra.mxu0 0.0
        %1307 = vmatprep.subr.mxu0 0.0
        %1308 = vmatpush1.msra.mxu0 0.0
        %1309 = vmatprep.subr.mxu0 0.0
        %1310 = vmatpush1.msra.mxu0 0.0
        %1311 = vmatprep.subr.mxu0 0.0
        %1312 = vmatpush1.msra.mxu0 0.0
        %1313 = vmatprep.subr.mxu0 0.0
        %1314 = vmatpush1.msra.mxu0 0.0
        %1315 = vmatprep.subr.mxu0 0.0
        %1316 = vmatpush1.msra.mxu0 0.0
        %1317 = vmatprep.subr.mxu0 0.0
        %1318 = vmatpush1.msra.mxu0 0.0
        %1319 = vmatprep.subr.mxu0 0.0
        %1320 = vmatpush1.msra.mxu0 0.0
        %1321 = vmatprep.subr.mxu0 0.0
        %1322 = vmatpush1.msra.mxu0 0.0
        %1323 = vmatprep.subr.mxu0 0.0
        %1324 = vmatpush1.msra.mxu0 0.0
        %1325 = vmatprep.subr.mxu0 0.0
        %1326 = vmatpush1.msra.mxu0 0.0
        %1327 = vmatprep.subr.mxu0 0.0
        %1328 = vmatpush1.msra.mxu0 0.0
        %1329 = vmatprep.subr.mxu0 0.0
        %1330 = vmatpush1.msra.mxu0 0.0
        %1331 = vmatprep.subr.mxu0 0.0
        %1332 = vmatpush1.msra.mxu0 0.0
        %1333 = vmatprep.subr.mxu0 0.0
        %1334 = vmatpush1.msra.mxu0 0.0
        %1335 = vmatprep.subr.mxu0 0.0
        %1336 = vmatpush1.msra.mxu0 0.0
        %1337 = vmatprep.subr.mxu0 0.0
        %1338 = vmatpush1.msra.mxu0 0.0
        %1339 = vmatprep.subr.mxu0 0.0
        %1340 = vmatpush1.msra.mxu0 0.0
        %1341 = vmatprep.mubr.f32.mxu0 0.0
        %1342 = vmatmul.mubr.f32.gmra.mrb[0].mxu0 %v1275
        %v1343 = vpop.f32.mrb[0].mxu0
        %v1344 = vadd.f32 0.0, %v1343
        %v1345 = vpop.f32.mrb[0].mxu0
        %v1346 = vadd.f32 0.0, %v1345
        %1347 = vdwg.mxu0
        %v1348 = vsel %vm643, %v1255, 0
        %1350 = vmatprep.subr.mxu0 %v1238
        %1351 = vmatpush1.msra.mxu0 %v1237
        %1352 = vmatprep.subr.mxu0 %v1246
        %1353 = vmatpush1.msra.mxu0 %v1245
        %1354 = vmatprep.subr.mxu0 %v1254
        %1355 = vmatpush1.msra.mxu0 %v1253
        %1356 = vmatprep.subr.mxu0 0.0
        %1357 = vmatpush1.msra.mxu0 0.0
        %1358 = vmatprep.subr.mxu0 0.0
        %1359 = vmatpush1.msra.mxu0 0.0
        %1360 = vmatprep.subr.mxu0 0.0
        %1361 = vmatpush1.msra.mxu0 0.0
        %1362 = vmatprep.subr.mxu0 0.0
        %1363 = vmatpush1.msra.mxu0 0.0
        %1364 = vmatprep.subr.mxu0 0.0
        %1365 = vmatpush1.msra.mxu0 0.0
        %1366 = vmatprep.subr.mxu0 0.0
        %1367 = vmatpush1.msra.mxu0 0.0
        %1368 = vmatprep.subr.mxu0 0.0
        %1369 = vmatpush1.msra.mxu0 0.0
        %1370 = vmatprep.subr.mxu0 0.0
        %1371 = vmatpush1.msra.mxu0 0.0
        %1372 = vmatprep.subr.mxu0 0.0
        %1373 = vmatpush1.msra.mxu0 0.0
        %1374 = vmatprep.subr.mxu0 0.0
        %1375 = vmatpush1.msra.mxu0 0.0
        %1376 = vmatprep.subr.mxu0 0.0
        %1377 = vmatpush1.msra.mxu0 0.0
        %1378 = vmatprep.subr.mxu0 0.0
        %1379 = vmatpush1.msra.mxu0 0.0
        %1380 = vmatprep.subr.mxu0 0.0
        %1381 = vmatpush1.msra.mxu0 0.0
        %1382 = vmatprep.subr.mxu0 0.0
        %1383 = vmatpush1.msra.mxu0 0.0
        %1384 = vmatprep.subr.mxu0 0.0
        %1385 = vmatpush1.msra.mxu0 0.0
        %1386 = vmatprep.subr.mxu0 0.0
        %1387 = vmatpush1.msra.mxu0 0.0
        %1388 = vmatprep.subr.mxu0 0.0
        %1389 = vmatpush1.msra.mxu0 0.0
        %1390 = vmatprep.subr.mxu0 0.0
        %1391 = vmatpush1.msra.mxu0 0.0
        %1392 = vmatprep.subr.mxu0 0.0
        %1393 = vmatpush1.msra.mxu0 0.0
        %1394 = vmatprep.subr.mxu0 0.0
        %1395 = vmatpush1.msra.mxu0 0.0
        %1396 = vmatprep.subr.mxu0 0.0
        %1397 = vmatpush1.msra.mxu0 0.0
        %1398 = vmatprep.subr.mxu0 0.0
        %1399 = vmatpush1.msra.mxu0 0.0
        %1400 = vmatprep.subr.mxu0 0.0
        %1401 = vmatpush1.msra.mxu0 0.0
        %1402 = vmatprep.subr.mxu0 0.0
        %1403 = vmatpush1.msra.mxu0 0.0
        %1404 = vmatprep.subr.mxu0 0.0
        %1405 = vmatpush1.msra.mxu0 0.0
        %1406 = vmatprep.subr.mxu0 0.0
        %1407 = vmatpush1.msra.mxu0 0.0
        %1408 = vmatprep.subr.mxu0 0.0
        %1409 = vmatpush1.msra.mxu0 0.0
        %1410 = vmatprep.subr.mxu0 0.0
        %1411 = vmatpush1.msra.mxu0 0.0
        %1412 = vmatprep.subr.mxu0 0.0
        %1413 = vmatpush1.msra.mxu0 0.0
        %1414 = vmatprep.mubr.f32.mxu0 0.0
        %1415 = vmatmul.mubr.f32.gmra.mrb[0].mxu0 %v1348
        %v1416 = vpop.f32.mrb[0].mxu0
        %v1417 = vadd.f32 %v1344, %v1416
        %v1418 = vpop.f32.mrb[0].mxu0
        %v1419 = vadd.f32 %v1346, %v1418
        %1420 = vdwg.mxu0
        %1421 = vrot.lane.b32.xlu0 %v1229, 113
        %v1422 = vpop.permute.xlu0 %1421
        %1423 = vrot.lane.b32.xlu0 %v1230, 113
        %v1424 = vpop.permute.xlu0 %1423
        %v1425 = vsel %vm794, %v1422, %v1424
        %v1426 = vsel %vm794, %v1424, %v1422
        %v1427 = vmul.f32 %v1425, %v800
        %v1428 = vmul.f32 %v1426, %v804
        %1429 = vrot.lane.b32.xlu0 %v1229, 112
        %v1430 = vpop.permute.xlu0 %1429
        %1431 = vrot.lane.b32.xlu0 %v1230, 112
        %v1432 = vpop.permute.xlu0 %1431
        %v1433 = vsel %vm811, %v1430, %v1432
        %v1434 = vsel %vm811, %v1432, %v1430
        %v1435 = vmul.f32 %v1433, %v817
        %v1436 = vmul.f32 %v1434, %v821
        %1437 = vrot.lane.b32.xlu0 %v1229, 111
        %v1438 = vpop.permute.xlu0 %1437
        %1439 = vrot.lane.b32.xlu0 %v1230, 111
        %v1440 = vpop.permute.xlu0 %1439
        %v1441 = vsel %vm828, %v1438, %v1440
        %v1442 = vsel %vm828, %v1440, %v1438
        %v1443 = vmul.f32 %v1441, %v834
        %v1444 = vmul.f32 %v1442, %v838
        %1445 = vrot.lane.b32.xlu0 %v1255, 80
        %v1446 = vpop.permute.xlu0 %1445
        %v1447 = vsel %vm643, %v1446, 0
        %1449 = vmatprep.subr.mxu0 %v1428
        %1450 = vmatpush1.msra.mxu0 %v1427
        %1451 = vmatprep.subr.mxu0 %v1436
        %1452 = vmatpush1.msra.mxu0 %v1435
        %1453 = vmatprep.subr.mxu0 %v1444
        %1454 = vmatpush1.msra.mxu0 %v1443
        %1455 = vmatprep.subr.mxu0 0.0
        %1456 = vmatpush1.msra.mxu0 0.0
        %1457 = vmatprep.subr.mxu0 0.0
        %1458 = vmatpush1.msra.mxu0 0.0
        %1459 = vmatprep.subr.mxu0 0.0
        %1460 = vmatpush1.msra.mxu0 0.0
        %1461 = vmatprep.subr.mxu0 0.0
        %1462 = vmatpush1.msra.mxu0 0.0
        %1463 = vmatprep.subr.mxu0 0.0
        %1464 = vmatpush1.msra.mxu0 0.0
        %1465 = vmatprep.subr.mxu0 0.0
        %1466 = vmatpush1.msra.mxu0 0.0
        %1467 = vmatprep.subr.mxu0 0.0
        %1468 = vmatpush1.msra.mxu0 0.0
        %1469 = vmatprep.subr.mxu0 0.0
        %1470 = vmatpush1.msra.mxu0 0.0
        %1471 = vmatprep.subr.mxu0 0.0
        %1472 = vmatpush1.msra.mxu0 0.0
        %1473 = vmatprep.subr.mxu0 0.0
        %1474 = vmatpush1.msra.mxu0 0.0
        %1475 = vmatprep.subr.mxu0 0.0
        %1476 = vmatpush1.msra.mxu0 0.0
        %1477 = vmatprep.subr.mxu0 0.0
        %1478 = vmatpush1.msra.mxu0 0.0
        %1479 = vmatprep.subr.mxu0 0.0
        %1480 = vmatpush1.msra.mxu0 0.0
        %1481 = vmatprep.subr.mxu0 0.0
        %1482 = vmatpush1.msra.mxu0 0.0
        %1483 = vmatprep.subr.mxu0 0.0
        %1484 = vmatpush1.msra.mxu0 0.0
        %1485 = vmatprep.subr.mxu0 0.0
        %1486 = vmatpush1.msra.mxu0 0.0
        %1487 = vmatprep.subr.mxu0 0.0
        %1488 = vmatpush1.msra.mxu0 0.0
        %1489 = vmatprep.subr.mxu0 0.0
        %1490 = vmatpush1.msra.mxu0 0.0
        %1491 = vmatprep.subr.mxu0 0.0
        %1492 = vmatpush1.msra.mxu0 0.0
        %1493 = vmatprep.subr.mxu0 0.0
        %1494 = vmatpush1.msra.mxu0 0.0
        %1495 = vmatprep.subr.mxu0 0.0
        %1496 = vmatpush1.msra.mxu0 0.0
        %1497 = vmatprep.subr.mxu0 0.0
        %1498 = vmatpush1.msra.mxu0 0.0
        %1499 = vmatprep.subr.mxu0 0.0
        %1500 = vmatpush1.msra.mxu0 0.0
        %1501 = vmatprep.subr.mxu0 0.0
        %1502 = vmatpush1.msra.mxu0 0.0
        %1503 = vmatprep.subr.mxu0 0.0
        %1504 = vmatpush1.msra.mxu0 0.0
        %1505 = vmatprep.subr.mxu0 0.0
        %1506 = vmatpush1.msra.mxu0 0.0
        %1507 = vmatprep.subr.mxu0 0.0
        %1508 = vmatpush1.msra.mxu0 0.0
        %1509 = vmatprep.subr.mxu0 0.0
        %1510 = vmatpush1.msra.mxu0 0.0
        %1511 = vmatprep.subr.mxu0 0.0
        %1512 = vmatpush1.msra.mxu0 0.0
        %1513 = vmatprep.mubr.f32.mxu0 0.0
        %1514 = vmatmul.mubr.f32.gmra.mrb[0].mxu0 %v1447
        %v1515 = vpop.f32.mrb[0].mxu0
        %v1516 = vadd.f32 0.0, %v1515
        %v1517 = vpop.f32.mrb[0].mxu0
        %v1518 = vadd.f32 0.0, %v1517
        %1519 = vdwg.mxu0
        %v1520 = vadd.f32 %v1417, %v1516
        %v1521 = vadd.f32 %v1419, %v1518
        %v1522 = vld [vmem:[%s9] sm:$0xff]
        %1524 = vset.pattern.permute.xlu0 0
        %1525 = vperm.xlu0 %1524, %v1522
        %v1526 = vpop.permute.xlu0 %1525
        %v1528 = vmul.f32 %v1520, %v1526
        %v1529 = vmul.f32 %v1521, %v1526
        %v1530 = vld [vmem:[%s10] sm:$0xff]
        %1532 = vset.pattern.permute.xlu0 0
        %1533 = vperm.xlu0 %1532, %v1530
        %v1534 = vpop.permute.xlu0 %1533
        %v1536 = vadd.f32 %v1528, %v1534
        %v1537 = vadd.f32 %v1529, %v1534
        %v1538 = vmax.f32 %v1536, 0.0
        %v1539 = vmax.f32 %v1537, 0.0
        %v1542 = vcombine.low %v1538, %v1539
        %1544 = vst [vmem:[%s453] sm:$0xff] %v1542
        %s1545 = sand.u32 %s280, 1
        %s1546 = scalar_lea.sflag [#allocation4], %s1545
        %s1547 = sand.u32 %s280, 1
        %s1548 = smul.addr %s1547, 8
        %s1549 = scalar_lea.vmem [#allocation8], %s1548
        // Predicated region
        $region77: #{tpu_custom_call.1} parent=63 // pred_check
          %p1550 = pneg %p290
        $region78: #{tpu_custom_call.1} parent=63 // pred_check_branch
          %1552 = sbr.rel (%p1550) target = $region80
        $region79: #{tpu_custom_call.1} parent=63 // pred_region
          %s1554 = ssub.s32 128, 128
          %1555 = vsyncadd %s1546, %s1554
          %s1556 = smul.addr %s31, 2
          %s1557 = smul.addr %s1556, 64
          %s1558 = scalar_lea.hbm %s11, %s1557
          %s1560 = sshll.u32 %s1549, 4
          %s1561 = int_to_ptr.vmem [resolvable:$true] %s1560
          %1563 = dma.vmem_to_hbm [thread:$0]  %s1561, 128, %s1558, %s1546
        $region80: #{tpu_custom_call.1} parent=63 // pred_fallthru
          _
      $region64: #{tpu_custom_call.1} parent=5 // pred_fallthru
        _
      %p1564 = scmp.le.s32.totalorder 2, %s26
      // Predicated region
      $region81: #{tpu_custom_call.1} parent=5 // pred_check
        %p1565 = pneg %p1564
      $region82: #{tpu_custom_call.1} parent=5 // pred_check_branch
        %1567 = sbr.rel (%p1565) target = $region84
      $region83: #{tpu_custom_call.1} parent=5 // pred_region
        %s1568 = ssub.s32 %s26, 2
        // Predicated region
        $region85: #{tpu_custom_call.1} parent=83 // pred_check
          %p1569 = pneg %p296
        $region86: #{tpu_custom_call.1} parent=83 // pred_check_branch
          %1571 = sbr.rel (%p1569) target = $region88
        $region87: #{tpu_custom_call.1} parent=83 // pred_region
          %s1572 = sand.u32 %s281, 1
          %s1573 = scalar_lea.sflag [#allocation4], %s1572
          %s1574 = sand.u32 %s281, 1
          %s1575 = smul.addr %s1574, 8
          %s1576 = scalar_lea.vmem [#allocation8], %s1575
          %1577 = dma.done %s1573, 128
        $region88: #{tpu_custom_call.1} parent=83 // pred_fallthru
          _
      $region84: #{tpu_custom_call.1} parent=5 // pred_fallthru
        _
    $region6: #{tpu_custom_call.1} parent=1 // loop_footer
      %s30 = sadd.s32 1, %s26
    $region7: #{tpu_custom_call.1} parent=1 // loop_footer_branch
      %25 = sbr.rel target = $region3
    $region8: #{tpu_custom_call.1} parent=1 // loop_exit
      _
    %1578 = vsyncpa [#allocation3], 1
    %s1579 = scalar_lea.sflag [#allocation3], 1
    %1580 = vsyncpa %s1579, 1
    %1581 = vsyncpa [#allocation6], 1
    %s1582 = scalar_lea.sflag [#allocation6], 1
    %1583 = vsyncpa %s1582, 1
    %1584 = vsyncpa [#allocation4], 1
    %s1585 = scalar_lea.sflag [#allocation4], 1
    %1586 = vsyncpa %s1585, 1

</llo_original>
